<compile_context>
chip_gen: v5e
topology: v5e:2x2
jax: 0.10.0
libtpu: 0.0.40
codegen_flags: <defaults>
</compile_context>

<pallas_src>
import functools

import jax
import jax.numpy as jnp
from jax import lax
from jax.experimental import pallas as pl
from jax.experimental.pallas import tpu as pltpu


# ----------------------------------------------------------------------------- kernel
def _flatblock_kernel(x_ref, w_ref, b_ref, o_ref, xpad_ref, xbf_ref, hpad_ref,
                      *, resident):
    """Grid = (ceil(N/B), L): B images through one ResnetBlock (layer l) per step.

    x_ref   : (B, H, WC)        f32   input images of this block (lane = x*C + c)
    w_ref   : (L|1, 6, WC, WC)  bf16  banded conv weights with BN scale pre-folded
                                       (taps 0..2: conv1 ky=0..2, taps 3..5: conv2)
    b_ref   : (L|1, 2, WC)      f32   folded BN biases [bias1, bias2]
    o_ref   : (B, H, WC)        f32   outputs (written at the last layer only)
    xpad_ref: (B*(H+2), WC)     f32   H-padded current activation (persists across l)
    xbf_ref : (B*(H+2), WC)     bf16  bf16 staging of xpad (cast once per layer)
    hpad_ref: (B*(H+2), WC)     bf16  H-padded hidden activation (conv1 output)
    """
    B, H, WC = x_ref.shape
    Hp = H + 2
    M = B * Hp

    layer = pl.program_id(1)
    n_layers = pl.num_programs(1)
    lw = layer if resident else 0           # layer index into the weight/bias refs

    # ---- first layer for this image block: zero halos, scatter the interiors ----
    @pl.when(layer == 0)
    def _load_input():
        xpad_ref[...] = jnp.zeros_like(xpad_ref)
        hpad_ref[...] = jnp.zeros_like(hpad_ref)
        for b in range(B):                  # static unroll; runs once per image block
            r0 = b * Hp + 1
            xpad_ref[r0:r0 + H, :] = x_ref[b]

    # Interior-row mask over padded rows 1..M-2 (zero on the inter-image halo rows).
    # Keeping the halo rows zero is what implements the conv's zero padding along H,
    # so any garbage computed on them must be masked out before write-back.
    r = lax.broadcasted_iota(jnp.int32, (M - 2, 1), 0) + 1
    rmod = r % Hp
    mask = jnp.logical_and(rmod >= 1, rmod <= H).astype(jnp.float32)

    biases = b_ref[lw]                      # (2, WC)
    b1 = biases[0:1, :]
    b2 = biases[1:2, :]

    # bf16 staging of the current activation: cast once, sliced 3x by the conv taps.
    xbf_ref[...] = xpad_ref[...].astype(jnp.bfloat16)

    def conv3x3(src_ref, base):
        # 3 lane-dense MXU dots with M = B*(H+2)-2 rows and K = W*C.  Horizontal taps
        # and the W zero-padding are folded into the banded (WC, WC) weights; vertical
        # taps come from the shifted row windows of the H-padded buffer.
        # Follow-up: fuse the 3 taps into one K=3*WC dot once the MXU slot is binding.
        acc = jnp.dot(src_ref[0:M - 2, :], w_ref[lw, base + 0],
                      preferred_element_type=jnp.float32)
        acc += jnp.dot(src_ref[1:M - 1, :], w_ref[lw, base + 1],
                       preferred_element_type=jnp.float32)
        acc += jnp.dot(src_ref[2:M, :], w_ref[lw, base + 2],
                       preferred_element_type=jnp.float32)
        return acc

    # conv1 (BN1 scale folded into weights) -> +bias -> ReLU; halo rows forced to 0.
    h = mask * jnp.maximum(conv3x3(xbf_ref, 0) + b1, 0.0)
    hpad_ref[1:M - 1, :] = h.astype(jnp.bfloat16)

    # conv2 (BN2 folded) -> +bias, residual add, final ReLU; halo rows forced to 0.
    y = conv3x3(hpad_ref, 3) + b2
    out = mask * jnp.maximum(xpad_ref[1:M - 1, :] + y, 0.0)
    xpad_ref[1:M - 1, :] = out              # carried to the next layer (stays in VMEM)

    @pl.when(layer == n_layers - 1)
    def _store_output():
        for b in range(B):                  # static unroll; runs once per image block
            r0 = b * Hp + 1
            o_ref[b] = xpad_ref[r0:r0 + H, :].astype(o_ref.dtype)


# ------------------------------------------------------------------------- parameters
def _fold_bn(gamma, beta, mean, var, eps=1e-5):
    scale = gamma / jnp.sqrt(var + eps)
    bias = beta - mean * scale
    return scale.reshape(1, -1), bias.reshape(1, -1)


def make_flatblock_params(key, planes, layers):
    """Each ResnetBlock: conv1 (3x3, no bias), BN1, conv2 (3x3, no bias), BN2.
    Conv weights are built in HWIO layout (3,3,Cin,Cout). BN is folded (inference)."""
    params = []
    for _ in range(layers):
        key, *ks = jax.random.split(key, 9)
        w1 = jax.random.normal(ks[0], (3, 3, planes, planes), jnp.float32) * 0.1
        w2 = jax.random.normal(ks[1], (3, 3, planes, planes), jnp.float32) * 0.1
        g1 = 1.0 + 0.1 * jax.random.normal(ks[2], (planes,), jnp.float32)
        be1 = 0.1 * jax.random.normal(ks[3], (planes,), jnp.float32)
        m1 = 0.1 * jax.random.normal(ks[4], (planes,), jnp.float32)
        v1 = jnp.abs(1.0 + 0.1 * jax.random.normal(ks[5], (planes,), jnp.float32))
        g2 = 1.0 + 0.1 * jax.random.normal(ks[6], (planes,), jnp.float32)
        be2 = 0.1 * jax.random.normal(ks[7], (planes,), jnp.float32)
        m2 = jnp.zeros((planes,), jnp.float32)
        v2 = jnp.ones((planes,), jnp.float32)
        s1, b1 = _fold_bn(g1, be1, m1, v1)
        s2, b2 = _fold_bn(g2, be2, m2, v2)
        params.append((w1, s1, b1, w2, s2, b2))
    return params


def _band_weight(w_hwio, W):
    """(3,3,C,C) HWIO -> (3, W*C, W*C): for each vertical tap ky a banded matrix B with
    B[xi*C+ci, xo*C+co] = w[ky, xi-xo+1, ci, co]; entries outside the band are zero,
    which implements zero padding along W for free."""
    C = w_hwio.shape[2]
    mats = []
    for ky in range(3):
        b = jnp.zeros((W * C, W * C), jnp.float32)
        for kx in range(3):
            shift = jnp.eye(W, W, k=1 - kx, dtype=jnp.float32)  # [xi,xo]=1 iff xi==xo+kx-1
            b = b + jnp.kron(shift, w_hwio[ky, kx])
        mats.append(b)
    return jnp.stack(mats, 0)


def prepare_flatblock_params(params, W):
    """Fold BN scales into the banded conv weights (host-side) and tile the biases.

    Returns WB: (L, 6, W*C, W*C) bf16 banded weights (conv1 taps 0..2, conv2 taps 3..5)
            SB: (L, 2, W*C)      f32  biases [bias1, bias2] tiled across the W lanes.
    """
    wb, sb = [], []
    for (w1, s1, b1, w2, s2, b2) in params:
        s1_l = jnp.tile(s1.reshape(-1), W)           # lane index = x*C + c
        s2_l = jnp.tile(s2.reshape(-1), W)
        band1 = _band_weight(w1, W) * s1_l[None, None, :]   # scale output columns
        band2 = _band_weight(w2, W) * s2_l[None, None, :]
        wb.append(jnp.concatenate([band1, band2], axis=0))
        sb.append(jnp.stack([jnp.tile(b1.reshape(-1), W),
                             jnp.tile(b2.reshape(-1), W)], axis=0))
    WB = jnp.stack(wb, 0).astype(jnp.bfloat16)
    SB = jnp.stack(sb, 0).astype(jnp.float32)
    return WB, SB


# ---------------------------------------------------------------------------- forward
@jax.jit
def flatblock_forward_nchw(x_nchw, WB, SB):
    """FlatBlock forward (inference BN). Input/output are NCHW (PyTorch convention)."""
    N, C, H, W = x_nchw.shape
    L = WB.shape[0]
    if L == 0:                            # FlatBlock(layers<=0) is identity
        return x_nchw
    WC = W * C
    assert WC % 128 == 0, "lane-dense layout requires W*C to be a multiple of 128"

    # B images per grid step; 32 keeps scratch + temporaries well inside VMEM on all
    # generations. (On v7x prefer a B that gives ceil(N/B) >= 2 so both TCs get work.)
    B = min(N, 32)
    NB = -(-N // B)
    N_pad = NB * B
    Hp = H + 2

    # NCHW -> NHWC -> lane-dense (N, H, W*C); pad batch to a multiple of B with zeros.
    x = jnp.transpose(x_nchw, (0, 2, 3, 1)).reshape(N, H, WC)
    if N_pad != N:
        x = jnp.pad(x, ((0, N_pad - N), (0, 0), (0, 0)))

    # --- VMEM budget: decide weight residency and size the compiler VMEM limit ------
    io_bytes = 2 * 2 * (B * H * WC * 4)             # double-buffered input + output blocks
    scratch_bytes = B * Hp * WC * (4 + 2 + 2)       # xpad f32 + xbf bf16 + hpad bf16
    wb_layer_bytes = 6 * WC * WC * 2                # one layer of banded bf16 weights
    resident_bytes = io_bytes + scratch_bytes + 2 * L * (wb_layer_bytes + 2 * WC * 4)
    weights_resident = resident_bytes <= 24 * 1024 * 1024
    need = io_bytes + scratch_bytes + (2 * L if weights_resident else 3) * wb_layer_bytes
    # <= 48 MiB keeps this legal on v7x's 64 MiB VMEM; v5e/v6e (128 MiB) have headroom.
    vmem_limit = int(min(48 * 1024 * 1024, max(32 * 1024 * 1024, 2 * need)))

    if weights_resident:
        # Full weight stack VMEM-resident: constant block index -> HBM fetch happens
        # exactly once per kernel call instead of once per image block per layer.
        w_spec = pl.BlockSpec((L, 6, WC, WC), lambda nb, l: (0, 0, 0, 0))
        b_spec = pl.BlockSpec((L, 2, WC), lambda nb, l: (0, 0, 0))
    else:
        # Stream one layer of weights per step (layer axis innermost), triple-buffered
        # so the weight DMA stays hidden behind the batched-MXU compute.
        w_spec = pl.BlockSpec((1, 6, WC, WC), lambda nb, l: (l, 0, 0, 0),
                              pipeline_mode=pl.Buffered(3))
        b_spec = pl.BlockSpec((1, 2, WC), lambda nb, l: (l, 0, 0))

    out = pl.pallas_call(
        functools.partial(_flatblock_kernel, resident=weights_resident),
        out_shape=jax.ShapeDtypeStruct((N_pad, H, WC), x.dtype),
        grid_spec=pltpu.PrefetchScalarGridSpec(
            num_scalar_prefetch=0,
            grid=(NB, L),                                    # layer axis innermost
            in_specs=[
                pl.BlockSpec((B, H, WC), lambda nb, l: (nb, 0, 0)),   # image block
                w_spec,                                               # conv weights
                b_spec,                                               # BN biases
            ],
            out_specs=pl.BlockSpec((B, H, WC), lambda nb, l: (nb, 0, 0)),
            scratch_shapes=[
                pltpu.VMEM((B * Hp, WC), jnp.float32),       # padded activation (f32)
                pltpu.VMEM((B * Hp, WC), jnp.bfloat16),      # bf16 staging of activation
                pltpu.VMEM((B * Hp, WC), jnp.bfloat16),      # padded hidden activation
            ]),
        compiler_params=pltpu.CompilerParams(
            dimension_semantics=("parallel", "arbitrary"),
            vmem_limit_bytes=vmem_limit),
    )(x, WB, SB)

    out = out[:N]
    return jnp.transpose(out.reshape(N, H, W, C), (0, 3, 1, 2))


# -------------------------------------------------------------------------- reference
def _reference_forward_nchw(x_nchw, params):
    """Pure-JAX reference (lax.conv, f32) for correctness checking."""
    x = jnp.transpose(x_nchw, (0, 2, 3, 1))
    for (w1, s1, b1, w2, s2, b2) in params:
        h = lax.conv_general_dilated(
            x, w1, window_strides=(1, 1), padding=((1, 1), (1, 1)),
            dimension_numbers=('NHWC', 'HWIO', 'NHWC'))
        h = jnp.maximum(h * s1.reshape(1, 1, 1, -1) + b1.reshape(1, 1, 1, -1), 0.0)
        y = lax.conv_general_dilated(
            h, w2, window_strides=(1, 1), padding=((1, 1), (1, 1)),
            dimension_numbers=('NHWC', 'HWIO', 'NHWC'))
        y = y * s2.reshape(1, 1, 1, -1) + b2.reshape(1, 1, 1, -1)
        x = jnp.maximum(x + y, 0.0)
    return jnp.transpose(x, (0, 3, 1, 2))


if __name__ == "__main__":
    N, C, H, W = 2, 8, 16, 16   # planes = 8, W*C = 128 (lane-dense precondition)
    LAYERS = 2

    key = jax.random.PRNGKey(0)
    kx, kp = jax.random.split(key)
    x = jax.random.normal(kx, (N, C, H, W), jnp.float32)
    params = make_flatblock_params(kp, planes=C, layers=LAYERS)
    WB, SB = prepare_flatblock_params(params, W)

    out = flatblock_forward_nchw(x, WB, SB)
    out = jax.block_until_ready(out)

    ref = _reference_forward_nchw(x, params)
    assert out.shape == (N, C, H, W)
    # bf16 MXU inputs / BN-folded bf16 weights (f32 accumulation) vs f32 reference.
    assert jnp.allclose(out, ref, atol=5e-2, rtol=5e-2), "mismatch vs reference"

    print("KERNEL_OK")
</pallas_src>

<mosaic_0001>
module attributes {stable_mosaic.version = 11 : i64} {
  func.func @_flatblock_kernel(%arg0: i32, %arg1: i32, %arg2: memref<2x16x128xf32, #tpu.memory_space<vmem>>, %arg3: memref<2x6x128x128xbf16, #tpu.memory_space<vmem>>, %arg4: memref<2x2x128xf32, #tpu.memory_space<vmem>>, %arg5: memref<2x16x128xf32, #tpu.memory_space<vmem>>, %arg6: memref<36x128xf32, #tpu.memory_space<vmem>>, %arg7: memref<36x128xbf16, #tpu.memory_space<vmem>>, %arg8: memref<36x128xbf16, #tpu.memory_space<vmem>>) attributes {dimension_semantics = [#tpu.dimension_semantics<parallel>, #tpu.dimension_semantics<arbitrary>], iteration_bounds = array<i64: 1, 2>, scalar_prefetch = 0 : i64, scratch_operands = 3 : i64, tpu.core_type = #tpu.core_type<tc>, window_params = [{transform_indices = @transform_0, window_bounds = array<i64: 2, 16, 128>}, {pipeline_mode = #tpu.pipeline_mode<synchronous>, transform_indices = @transform_1, window_bounds = array<i64: 2, 6, 128, 128>}, {pipeline_mode = #tpu.pipeline_mode<synchronous>, transform_indices = @transform_2, window_bounds = array<i64: 2, 2, 128>}, {transform_indices = @transform_3, window_bounds = array<i64: 2, 16, 128>}]} {
    %c0_i32 = arith.constant 0 : i32
    %0 = arith.cmpi eq, %arg1, %c0_i32 : i32
    %1 = arith.extui %0 : i1 to i32
    %c0_i32_0 = arith.constant 0 : i32
    %2 = arith.cmpi ne, %1, %c0_i32_0 : i32
    scf.if %2 {
      %cst_52 = arith.constant 0.000000e+00 : f32
      %91 = vector.broadcast %cst_52 : f32 to vector<36x128xf32>
      %c0_53 = arith.constant 0 : index
      %c0_54 = arith.constant 0 : index
      %92 = vector.load %arg6[%c0_53, %c0_54] : memref<36x128xf32, #tpu.memory_space<vmem>>, vector<36x128xf32>
      tpu.vector_store %arg6[%c0_53, %c0_54], %91 {strides = array<i32>} : memref<36x128xf32, #tpu.memory_space<vmem>>, vector<36x128xf32>,
      %cst_55 = arith.constant 0.000000e+00 : bf16
      %93 = vector.broadcast %cst_55 : bf16 to vector<36x128xbf16>
      %c0_56 = arith.constant 0 : index
      %c0_57 = arith.constant 0 : index
      %94 = vector.load %arg8[%c0_56, %c0_57] : memref<36x128xbf16, #tpu.memory_space<vmem>>, vector<36x128xbf16>
      tpu.vector_store %arg8[%c0_56, %c0_57], %93 {strides = array<i32>} : memref<36x128xbf16, #tpu.memory_space<vmem>>, vector<36x128xbf16>,
      %c0_58 = arith.constant 0 : index
      %c0_59 = arith.constant 0 : index
      %c0_60 = arith.constant 0 : index
      %95 = vector.load %arg2[%c0_58, %c0_59, %c0_60] : memref<2x16x128xf32, #tpu.memory_space<vmem>>, vector<1x16x128xf32>
      %96 = vector.shape_cast %95 : vector<1x16x128xf32> to vector<16x128xf32>
      %c1_61 = arith.constant 1 : index
      %c0_62 = arith.constant 0 : index
      %97 = vector.load %arg6[%c1_61, %c0_62] : memref<36x128xf32, #tpu.memory_space<vmem>>, vector<16x128xf32>
      tpu.vector_store %arg6[%c1_61, %c0_62], %96 {strides = array<i32>} : memref<36x128xf32, #tpu.memory_space<vmem>>, vector<16x128xf32>,
      %c1_63 = arith.constant 1 : index
      %c0_64 = arith.constant 0 : index
      %c0_65 = arith.constant 0 : index
      %98 = vector.load %arg2[%c1_63, %c0_64, %c0_65] : memref<2x16x128xf32, #tpu.memory_space<vmem>>, vector<1x16x128xf32>
      %99 = vector.shape_cast %98 : vector<1x16x128xf32> to vector<16x128xf32>
      %c19 = arith.constant 19 : index
      %c0_66 = arith.constant 0 : index
      %100 = vector.load %arg6[%c19, %c0_66] : memref<36x128xf32, #tpu.memory_space<vmem>>, vector<16x128xf32>
      tpu.vector_store %arg6[%c19, %c0_66], %99 {strides = array<i32>} : memref<36x128xf32, #tpu.memory_space<vmem>>, vector<16x128xf32>,
    } else {
    }
    %3 = tpu.iota {dimensions = array<i32: 0>} : vector<34x1xi32>
    %c1_i32 = arith.constant 1 : i32
    %4 = vector.broadcast %c1_i32 : i32 to vector<34x1xi32>
    %5 = arith.addi %3, %4 : vector<34x1xi32>
    %c18_i32 = arith.constant 18 : i32
    %c0_i32_1 = arith.constant 0 : i32
    %6 = arith.cmpi eq, %c18_i32, %c0_i32_1 : i32
    %c1_i32_2 = arith.constant 1 : i32
    %7 = arith.select %6, %c1_i32_2, %c18_i32 : i32
    %8 = vector.broadcast %7 : i32 to vector<34x1xi32>
    %9 = arith.remsi %5, %8 : vector<34x1xi32>
    %c0_i32_3 = arith.constant 0 : i32
    %10 = vector.broadcast %c0_i32_3 : i32 to vector<34x1xi32>
    %11 = arith.cmpi ne, %9, %10 : vector<34x1xi32>
    %c0_i32_4 = arith.constant 0 : i32
    %12 = vector.broadcast %c0_i32_4 : i32 to vector<34x1xi32>
    %13 = arith.cmpi slt, %9, %12 : vector<34x1xi32>
    %c0_i32_5 = arith.constant 0 : i32
    %14 = arith.cmpi slt, %7, %c0_i32_5 : i32
    %15 = vector.broadcast %14 : i1 to vector<34x1xi1>
    %16 = vector.broadcast %15 : vector<34x1xi1> to vector<34x1xi1>
    %17 = arith.xori %13, %16 : vector<34x1xi1>
    %18 = arith.andi %17, %11 : vector<34x1xi1>
    %19 = vector.broadcast %7 : i32 to vector<34x1xi32>
    %20 = arith.addi %9, %19 : vector<34x1xi32>
    %21 = arith.select %18, %20, %9 : vector<34x1xi1>, vector<34x1xi32>
    %c1_i32_6 = arith.constant 1 : i32
    %22 = vector.broadcast %c1_i32_6 : i32 to vector<34x1xi32>
    %23 = arith.cmpi sge, %21, %22 : vector<34x1xi32>
    %c16_i32 = arith.constant 16 : i32
    %24 = vector.broadcast %c16_i32 : i32 to vector<34x1xi32>
    %25 = arith.cmpi sle, %21, %24 : vector<34x1xi32>
    %26 = arith.andi %23, %25 : vector<34x1xi1>
    %27 = arith.extui %26 : vector<34x1xi1> to vector<34x1xi32>
    %28 = arith.sitofp %27 : vector<34x1xi32> to vector<34x1xf32>
    %29 = arith.index_cast %arg1 : i32 to index
    %c0 = arith.constant 0 : index
    %c0_7 = arith.constant 0 : index
    %30 = vector.load %arg4[%29, %c0, %c0_7] : memref<2x2x128xf32, #tpu.memory_space<vmem>>, vector<1x2x128xf32>
    %31 = vector.shape_cast %30 : vector<1x2x128xf32> to vector<2x128xf32>
    %32 = vector.extract_strided_slice %31 {offsets = [0, 0], sizes = [1, 128], strides = [1, 1]} : vector<2x128xf32> to vector<1x128xf32>
    %33 = vector.extract_strided_slice %31 {offsets = [1, 0], sizes = [1, 128], strides = [1, 1]} : vector<2x128xf32> to vector<1x128xf32>
    %c0_8 = arith.constant 0 : index
    %c0_9 = arith.constant 0 : index
    %34 = vector.load %arg6[%c0_8, %c0_9] : memref<36x128xf32, #tpu.memory_space<vmem>>, vector<36x128xf32>
    %35 = arith.truncf %34 : vector<36x128xf32> to vector<36x128xbf16>
    %c0_10 = arith.constant 0 : index
    %c0_11 = arith.constant 0 : index
    %36 = vector.load %arg7[%c0_10, %c0_11] : memref<36x128xbf16, #tpu.memory_space<vmem>>, vector<36x128xbf16>
    tpu.vector_store %arg7[%c0_10, %c0_11], %35 {strides = array<i32>} : memref<36x128xbf16, #tpu.memory_space<vmem>>, vector<36x128xbf16>,
    %c0_12 = arith.constant 0 : index
    %c0_13 = arith.constant 0 : index
    %37 = vector.load %arg7[%c0_12, %c0_13] : memref<36x128xbf16, #tpu.memory_space<vmem>>, vector<34x128xbf16>
    %38 = arith.index_cast %arg1 : i32 to index
    %c0_14 = arith.constant 0 : index
    %c0_15 = arith.constant 0 : index
    %c0_16 = arith.constant 0 : index
    %39 = vector.load %arg3[%38, %c0_14, %c0_15, %c0_16] : memref<2x6x128x128xbf16, #tpu.memory_space<vmem>>, vector<1x1x128x128xbf16>
    %40 = vector.shape_cast %39 : vector<1x1x128x128xbf16> to vector<128x128xbf16>
    %cst = arith.constant dense<0.000000e+00> : vector<34x128xf32>
    %41 = tpu.matmul %37, %40, %cst {dimension_numbers = #tpu.dot_dimension_numbers<[1], [0], [0], [1], [0, 0, 1, 1], [], []>} : vector<34x128xbf16>, vector<128x128xbf16>, vector<34x128xf32> -> vector<34x128xf32>
    %c1 = arith.constant 1 : index
    %c0_17 = arith.constant 0 : index
    %42 = vector.load %arg7[%c1, %c0_17] : memref<36x128xbf16, #tpu.memory_space<vmem>>, vector<34x128xbf16>
    %43 = arith.index_cast %arg1 : i32 to index
    %c1_18 = arith.constant 1 : index
    %c0_19 = arith.constant 0 : index
    %c0_20 = arith.constant 0 : index
    %44 = vector.load %arg3[%43, %c1_18, %c0_19, %c0_20] : memref<2x6x128x128xbf16, #tpu.memory_space<vmem>>, vector<1x1x128x128xbf16>
    %45 = vector.shape_cast %44 : vector<1x1x128x128xbf16> to vector<128x128xbf16>
    %cst_21 = arith.constant dense<0.000000e+00> : vector<34x128xf32>
    %46 = tpu.matmul %42, %45, %cst_21 {dimension_numbers = #tpu.dot_dimension_numbers<[1], [0], [0], [1], [0, 0, 1, 1], [], []>} : vector<34x128xbf16>, vector<128x128xbf16>, vector<34x128xf32> -> vector<34x128xf32>
    %47 = arith.addf %41, %46 : vector<34x128xf32>
    %c2 = arith.constant 2 : index
    %c0_22 = arith.constant 0 : index
    %48 = vector.load %arg7[%c2, %c0_22] : memref<36x128xbf16, #tpu.memory_space<vmem>>, vector<34x128xbf16>
    %49 = arith.index_cast %arg1 : i32 to index
    %c2_23 = arith.constant 2 : index
    %c0_24 = arith.constant 0 : index
    %c0_25 = arith.constant 0 : index
    %50 = vector.load %arg3[%49, %c2_23, %c0_24, %c0_25] : memref<2x6x128x128xbf16, #tpu.memory_space<vmem>>, vector<1x1x128x128xbf16>
    %51 = vector.shape_cast %50 : vector<1x1x128x128xbf16> to vector<128x128xbf16>
    %cst_26 = arith.constant dense<0.000000e+00> : vector<34x128xf32>
    %52 = tpu.matmul %48, %51, %cst_26 {dimension_numbers = #tpu.dot_dimension_numbers<[1], [0], [0], [1], [0, 0, 1, 1], [], []>} : vector<34x128xbf16>, vector<128x128xbf16>, vector<34x128xf32> -> vector<34x128xf32>
    %53 = arith.addf %47, %52 : vector<34x128xf32>
    %54 = vector.broadcast %32 : vector<1x128xf32> to vector<34x128xf32>
    %55 = arith.addf %53, %54 : vector<34x128xf32>
    %cst_27 = arith.constant 0.000000e+00 : f32
    %56 = vector.broadcast %cst_27 : f32 to vector<34x128xf32>
    %57 = arith.maximumf %55, %56 : vector<34x128xf32>
    %58 = vector.broadcast %28 : vector<34x1xf32> to vector<34x128xf32>
    %59 = arith.mulf %58, %57 : vector<34x128xf32>
    %60 = arith.truncf %59 : vector<34x128xf32> to vector<34x128xbf16>
    %c1_28 = arith.constant 1 : index
    %c0_29 = arith.constant 0 : index
    %61 = vector.load %arg8[%c1_28, %c0_29] : memref<36x128xbf16, #tpu.memory_space<vmem>>, vector<34x128xbf16>
    tpu.vector_store %arg8[%c1_28, %c0_29], %60 {strides = array<i32>} : memref<36x128xbf16, #tpu.memory_space<vmem>>, vector<34x128xbf16>,
    %c0_30 = arith.constant 0 : index
    %c0_31 = arith.constant 0 : index
    %62 = vector.load %arg8[%c0_30, %c0_31] : memref<36x128xbf16, #tpu.memory_space<vmem>>, vector<34x128xbf16>
    %63 = arith.index_cast %arg1 : i32 to index
    %c3 = arith.constant 3 : index
    %c0_32 = arith.constant 0 : index
    %c0_33 = arith.constant 0 : index
    %64 = vector.load %arg3[%63, %c3, %c0_32, %c0_33] : memref<2x6x128x128xbf16, #tpu.memory_space<vmem>>, vector<1x1x128x128xbf16>
    %65 = vector.shape_cast %64 : vector<1x1x128x128xbf16> to vector<128x128xbf16>
    %cst_34 = arith.constant dense<0.000000e+00> : vector<34x128xf32>
    %66 = tpu.matmul %62, %65, %cst_34 {dimension_numbers = #tpu.dot_dimension_numbers<[1], [0], [0], [1], [0, 0, 1, 1], [], []>} : vector<34x128xbf16>, vector<128x128xbf16>, vector<34x128xf32> -> vector<34x128xf32>
    %c1_35 = arith.constant 1 : index
    %c0_36 = arith.constant 0 : index
    %67 = vector.load %arg8[%c1_35, %c0_36] : memref<36x128xbf16, #tpu.memory_space<vmem>>, vector<34x128xbf16>
    %68 = arith.index_cast %arg1 : i32 to index
    %c4 = arith.constant 4 : index
    %c0_37 = arith.constant 0 : index
    %c0_38 = arith.constant 0 : index
    %69 = vector.load %arg3[%68, %c4, %c0_37, %c0_38] : memref<2x6x128x128xbf16, #tpu.memory_space<vmem>>, vector<1x1x128x128xbf16>
    %70 = vector.shape_cast %69 : vector<1x1x128x128xbf16> to vector<128x128xbf16>
    %cst_39 = arith.constant dense<0.000000e+00> : vector<34x128xf32>
    %71 = tpu.matmul %67, %70, %cst_39 {dimension_numbers = #tpu.dot_dimension_numbers<[1], [0], [0], [1], [0, 0, 1, 1], [], []>} : vector<34x128xbf16>, vector<128x128xbf16>, vector<34x128xf32> -> vector<34x128xf32>
    %72 = arith.addf %66, %71 : vector<34x128xf32>
    %c2_40 = arith.constant 2 : index
    %c0_41 = arith.constant 0 : index
    %73 = vector.load %arg8[%c2_40, %c0_41] : memref<36x128xbf16, #tpu.memory_space<vmem>>, vector<34x128xbf16>
    %74 = arith.index_cast %arg1 : i32 to index
    %c5 = arith.constant 5 : index
    %c0_42 = arith.constant 0 : index
    %c0_43 = arith.constant 0 : index
    %75 = vector.load %arg3[%74, %c5, %c0_42, %c0_43] : memref<2x6x128x128xbf16, #tpu.memory_space<vmem>>, vector<1x1x128x128xbf16>
    %76 = vector.shape_cast %75 : vector<1x1x128x128xbf16> to vector<128x128xbf16>
    %cst_44 = arith.constant dense<0.000000e+00> : vector<34x128xf32>
    %77 = tpu.matmul %73, %76, %cst_44 {dimension_numbers = #tpu.dot_dimension_numbers<[1], [0], [0], [1], [0, 0, 1, 1], [], []>} : vector<34x128xbf16>, vector<128x128xbf16>, vector<34x128xf32> -> vector<34x128xf32>
    %78 = arith.addf %72, %77 : vector<34x128xf32>
    %79 = vector.broadcast %33 : vector<1x128xf32> to vector<34x128xf32>
    %80 = arith.addf %78, %79 : vector<34x128xf32>
    %c1_45 = arith.constant 1 : index
    %c0_46 = arith.constant 0 : index
    %81 = vector.load %arg6[%c1_45, %c0_46] : memref<36x128xf32, #tpu.memory_space<vmem>>, vector<34x128xf32>
    %82 = arith.addf %81, %80 : vector<34x128xf32>
    %cst_47 = arith.constant 0.000000e+00 : f32
    %83 = vector.broadcast %cst_47 : f32 to vector<34x128xf32>
    %84 = arith.maximumf %82, %83 : vector<34x128xf32>
    %85 = vector.broadcast %28 : vector<34x1xf32> to vector<34x128xf32>
    %86 = arith.mulf %85, %84 : vector<34x128xf32>
    %c1_48 = arith.constant 1 : index
    %c0_49 = arith.constant 0 : index
    %87 = vector.load %arg6[%c1_48, %c0_49] : memref<36x128xf32, #tpu.memory_space<vmem>>, vector<34x128xf32>
    tpu.vector_store %arg6[%c1_48, %c0_49], %86 {strides = array<i32>} : memref<36x128xf32, #tpu.memory_space<vmem>>, vector<34x128xf32>,
    %c1_i32_50 = arith.constant 1 : i32
    %88 = arith.cmpi eq, %arg1, %c1_i32_50 : i32
    %89 = arith.extui %88 : i1 to i32
    %c0_i32_51 = arith.constant 0 : i32
    %90 = arith.cmpi ne, %89, %c0_i32_51 : i32
    scf.if %90 {
      %c1_52 = arith.constant 1 : index
      %c0_53 = arith.constant 0 : index
      %91 = vector.load %arg6[%c1_52, %c0_53] : memref<36x128xf32, #tpu.memory_space<vmem>>, vector<16x128xf32>
      %c0_54 = arith.constant 0 : index
      %c0_55 = arith.constant 0 : index
      %c0_56 = arith.constant 0 : index
      %92 = vector.load %arg5[%c0_54, %c0_55, %c0_56] : memref<2x16x128xf32, #tpu.memory_space<vmem>>, vector<1x16x128xf32>
      %93 = vector.shape_cast %92 : vector<1x16x128xf32> to vector<16x128xf32>
      %94 = vector.shape_cast %91 : vector<16x128xf32> to vector<1x16x128xf32>
      tpu.vector_store %arg5[%c0_54, %c0_55, %c0_56], %94 {strides = array<i32>} : memref<2x16x128xf32, #tpu.memory_space<vmem>>, vector<1x16x128xf32>,
      %c19 = arith.constant 19 : index
      %c0_57 = arith.constant 0 : index
      %95 = vector.load %arg6[%c19, %c0_57] : memref<36x128xf32, #tpu.memory_space<vmem>>, vector<16x128xf32>
      %c1_58 = arith.constant 1 : index
      %c0_59 = arith.constant 0 : index
      %c0_60 = arith.constant 0 : index
      %96 = vector.load %arg5[%c1_58, %c0_59, %c0_60] : memref<2x16x128xf32, #tpu.memory_space<vmem>>, vector<1x16x128xf32>
      %97 = vector.shape_cast %96 : vector<1x16x128xf32> to vector<16x128xf32>
      %98 = vector.shape_cast %95 : vector<16x128xf32> to vector<1x16x128xf32>
      tpu.vector_store %arg5[%c1_58, %c0_59, %c0_60], %98 {strides = array<i32>} : memref<2x16x128xf32, #tpu.memory_space<vmem>>, vector<1x16x128xf32>,
    } else {
    }
    return
  }
  func.func @transform_0(%arg0: i32, %arg1: i32) -> (i32, i32, i32) {
    %c0_i32 = arith.constant 0 : i32
    %c0_i32_0 = arith.constant 0 : i32
    %c0_i32_1 = arith.constant 0 : i32
    return %arg0, %c0_i32, %c0_i32_0 : i32, i32, i32
  }
  func.func @transform_1(%arg0: i32, %arg1: i32) -> (i32, i32, i32, i32) {
    %c0_i32 = arith.constant 0 : i32
    %c0_i32_0 = arith.constant 0 : i32
    %c0_i32_1 = arith.constant 0 : i32
    %c0_i32_2 = arith.constant 0 : i32
    %c0_i32_3 = arith.constant 0 : i32
    return %c0_i32, %c0_i32_0, %c0_i32_1, %c0_i32_2 : i32, i32, i32, i32
  }
  func.func @transform_2(%arg0: i32, %arg1: i32) -> (i32, i32, i32) {
    %c0_i32 = arith.constant 0 : i32
    %c0_i32_0 = arith.constant 0 : i32
    %c0_i32_1 = arith.constant 0 : i32
    %c0_i32_2 = arith.constant 0 : i32
    return %c0_i32, %c0_i32_0, %c0_i32_1 : i32, i32, i32
  }
  func.func @transform_3(%arg0: i32, %arg1: i32) -> (i32, i32, i32) {
    %c0_i32 = arith.constant 0 : i32
    %c0_i32_0 = arith.constant 0 : i32
    %c0_i32_1 = arith.constant 0 : i32
    return %arg0, %c0_i32, %c0_i32_0 : i32, i32, i32
  }
}

</mosaic_0001>

<llo_original>
// kernel: flatblock_forward_nchw.1
$region0: #{flatblock_forward_nchw.1}
  #allocation0 [shape = 'u32[]', space=smem, size = 0x4, offset = 0x4, fixed_abs, tag = 'smem constant byte address 0x4 - core index']
  #allocation1 [shape = 'u32[72,128]{1,0:T(1,128)}', space=vmem, size = 0x9000, scoped, tag = 'internal scratch']
  #allocation2 [shape = 'f32[36,128]{1,0:T(8,128)}', space=vmem, size = 0x5000, scoped, tag = 'scratch operand']
  #allocation3 [shape = 'bf16[36,128]{1,0:T(8,128)(2,1)}', space=vmem, size = 0x2800, scoped, tag = 'scratch operand']
  #allocation4 [shape = 'bf16[36,128]{1,0:T(8,128)(2,1)}', space=vmem, size = 0x2800, scoped, tag = 'scratch operand']
  %s0 = inlined_call_operand.vmem [shape: f32[2,16,128], index: 0, kind: input, shape index: {}]
  %s1 = inlined_call_operand.vmem [shape: bf16[2,6,128,128], index: 1, kind: input, shape index: {}]
  %s2 = inlined_call_operand.vmem [shape: f32[2,2,128], index: 2, kind: input, shape index: {}]
  %s3 = inlined_call_operand.vmem [shape: f32[2,16,128], index: 3, kind: output, shape index: {}]
  %s4 = sld [smem:[#allocation0]]
  $region53: #{flatblock_forward_nchw.1} parent=0
    _
  %s6 = ssub.s32 1, %s4
  %s7 = scalar_select 0, %s6, %s4
  loop: start=0, step=1, limit=4
  $region2: #{flatblock_forward_nchw.1} parent=0 // loop_pre_header
    _
  $region3: #{flatblock_forward_nchw.1} parent=0 // loop_header
    %s9 = sphi 0, %s13
    %p10 = scmp.ge.s32.totalorder %s9, 4
    %s16 = sphi 0, %s28
    %s17 = sphi 0, %s24
    %s18 = sphi 0, %s16
    %s19 = sphi 0, %s17
    %s20 = sphi 0, %s18
    %s21 = sphi 0, %s19
    %s31 = sphi 0, %s33
    %s34 = sphi 0, %s31
    %s35 = sphi 0, %s34
    %s51 = sphi 0, %s35
    %s55 = sphi 0, %s55
    %s57 = sphi 0, %s55
    %s58 = sphi 0, %s57
    %s72 = sphi 0, %s58
    %s76 = sphi 0, %s76
    %s78 = sphi 0, %s76
    %s79 = sphi 0, %s78
    %s93 = sphi 0, %s79
    %s99 = sphi 0, %s101
    %s102 = sphi 0, %s99
    %s103 = sphi 0, %s102
    %s119 = sphi 0, %s103
  $region4: #{flatblock_forward_nchw.1} parent=0 // loop_header_branch
    %12 = sbr.rel (%p10) target = $region8
  $region5: #{flatblock_forward_nchw.1} parent=0 // loop_body
    %s14 = ssub.s32 %s9, 1
    %s15 = ssub.s32 %s9, 2
    %s22 = sadd.s32 1, %s17
    %p23 = scmp.ge.s32.totalorder %s22, 2
    %s24 = scalar_select %p23, 0, %s22
    %s25 = sadd.s32 1, %s16
    %s26 = scalar_select %p23, %s25, %s16
    %p27 = scmp.ge.s32.totalorder %s26, 1
    %s28 = scalar_select %p27, 0, %s26
    %s29 = ssub.s32 %s16, %s28
    %p30 = scmp.eq.s32.totalorder %s29, 0
    %s32 = sadd.s32 %s31, 1
    %s33 = scalar_select %p30, %s31, %s32
    %p36 = pneg %p30
    %p37 = scmp.eq.s32.totalorder %s9, 1
    %p38 = por %p36, %p37
    %p39 = scmp.ne.s32.totalorder %s31, %s34
    %p40 = scmp.eq.s32.totalorder %s9, 0
    %p41 = por %p39, %p40
    %p42 = scmp.ne.s32.totalorder %s31, %s34
    %p43 = scmp.eq.s32.totalorder %s14, 1
    %p44 = por %p42, %p43
    %p45 = scmp.ne.s32.totalorder %s34, %s35
    %p46 = scmp.eq.s32.totalorder %s14, 0
    %p47 = por %p45, %p46
    %p48 = scmp.ne.s32.totalorder %s34, %s35
    %p49 = scmp.eq.s32.totalorder %s15, 1
    %p50 = por %p48, %p49
    %p52 = scmp.ne.s32.totalorder %s35, %s51
    %p53 = scmp.eq.s32.totalorder %s15, 0
    %p54 = por %p52, %p53
    %s56 = sadd.s32 %s55, 1
    %p59 = scmp.eq.s32.totalorder %s9, 1
    %p60 = scmp.ne.s32.totalorder %s55, %s57
    %p61 = scmp.eq.s32.totalorder %s9, 0
    %p62 = por %p60, %p61
    %p63 = scmp.ne.s32.totalorder %s55, %s57
    %p64 = scmp.eq.s32.totalorder %s14, 1
    %p65 = por %p63, %p64
    %p66 = scmp.ne.s32.totalorder %s57, %s58
    %p67 = scmp.eq.s32.totalorder %s14, 0
    %p68 = por %p66, %p67
    %p69 = scmp.ne.s32.totalorder %s57, %s58
    %p70 = scmp.eq.s32.totalorder %s15, 1
    %p71 = por %p69, %p70
    %p73 = scmp.ne.s32.totalorder %s58, %s72
    %p74 = scmp.eq.s32.totalorder %s15, 0
    %p75 = por %p73, %p74
    %s77 = sadd.s32 %s76, 1
    %p80 = scmp.eq.s32.totalorder %s9, 1
    %p81 = scmp.ne.s32.totalorder %s76, %s78
    %p82 = scmp.eq.s32.totalorder %s9, 0
    %p83 = por %p81, %p82
    %p84 = scmp.ne.s32.totalorder %s76, %s78
    %p85 = scmp.eq.s32.totalorder %s14, 1
    %p86 = por %p84, %p85
    %p87 = scmp.ne.s32.totalorder %s78, %s79
    %p88 = scmp.eq.s32.totalorder %s14, 0
    %p89 = por %p87, %p88
    %p90 = scmp.ne.s32.totalorder %s78, %s79
    %p91 = scmp.eq.s32.totalorder %s15, 1
    %p92 = por %p90, %p91
    %p94 = scmp.ne.s32.totalorder %s79, %s93
    %p95 = scmp.eq.s32.totalorder %s15, 0
    %p96 = por %p94, %p95
    %s97 = ssub.s32 %s16, %s28
    %p98 = scmp.eq.s32.totalorder %s97, 0
    %s100 = sadd.s32 %s99, 1
    %s101 = scalar_select %p98, %s99, %s100
    %p104 = pneg %p98
    %p105 = scmp.eq.s32.totalorder %s9, 1
    %p106 = por %p104, %p105
    %p107 = scmp.ne.s32.totalorder %s99, %s102
    %p108 = scmp.eq.s32.totalorder %s9, 0
    %p109 = por %p107, %p108
    %p110 = scmp.ne.s32.totalorder %s99, %s102
    %p111 = scmp.eq.s32.totalorder %s14, 1
    %p112 = por %p110, %p111
    %p113 = scmp.ne.s32.totalorder %s102, %s103
    %p114 = scmp.eq.s32.totalorder %s14, 0
    %p115 = por %p113, %p114
    %p116 = scmp.ne.s32.totalorder %s102, %s103
    %p117 = scmp.eq.s32.totalorder %s15, 1
    %p118 = por %p116, %p117
    %p120 = scmp.ne.s32.totalorder %s103, %s119
    %p121 = scmp.eq.s32.totalorder %s15, 0
    %p122 = por %p120, %p121
    %p123 = scmp.le.s32.totalorder 1, %s9
    %p124 = scmp.lt.s32.totalorder %s9, 3
    %p125 = pnand %p123, %p124
    %p126 = pneg %p125
    // Predicated region
    $region9: #{flatblock_forward_nchw.1} parent=5 // pred_check
      _
    $region10: #{flatblock_forward_nchw.1} parent=5 // pred_check_branch
      %128 = sbr.rel (%p125) target = $region12
    $region11: #{flatblock_forward_nchw.1} parent=5 // pred_region
      %s129 = ssub.s32 %s9, 1
      // Predicated region
      $region13: #{flatblock_forward_nchw.1} parent=11 // pred_check
        %p130 = pneg %p47
      $region14: #{flatblock_forward_nchw.1} parent=11 // pred_check_branch
        %132 = sbr.rel (%p130) target = $region16
      $region15: #{flatblock_forward_nchw.1} parent=11 // pred_region
        %s133 = smul.u32 2, %s18
        %p134 = scmp.lt.s32.totalorder %s133, 1
        %s135 = scalar_select %p134, %s133, 1
        %s136 = smul.addr %s135, 2
        %s137 = smul.addr %s136, 8
        %s138 = scalar_lea.vmem %s0, %s137
        %s139 = smul.u32 2, %s18
      $region16: #{flatblock_forward_nchw.1} parent=11 // pred_fallthru
        _
      // Predicated region
      $region17: #{flatblock_forward_nchw.1} parent=11 // pred_check
        %p140 = pneg %p68
      $region18: #{flatblock_forward_nchw.1} parent=11 // pred_check_branch
        %142 = sbr.rel (%p140) target = $region20
      $region19: #{flatblock_forward_nchw.1} parent=11 // pred_region
        _
      $region20: #{flatblock_forward_nchw.1} parent=11 // pred_fallthru
        _
      // Predicated region
      $region21: #{flatblock_forward_nchw.1} parent=11 // pred_check
        %p143 = pneg %p89
      $region22: #{flatblock_forward_nchw.1} parent=11 // pred_check_branch
        %145 = sbr.rel (%p143) target = $region24
      $region23: #{flatblock_forward_nchw.1} parent=11 // pred_region
        _
      $region24: #{flatblock_forward_nchw.1} parent=11 // pred_fallthru
        _
    $region12: #{flatblock_forward_nchw.1} parent=5 // pred_fallthru
      _
    %p146 = scmp.lt.s32.totalorder %s9, 2
    // Predicated region
    $region25: #{flatblock_forward_nchw.1} parent=5 // pred_check
      %p147 = pneg %p146
    $region26: #{flatblock_forward_nchw.1} parent=5 // pred_check_branch
      %149 = sbr.rel (%p147) target = $region28
    $region27: #{flatblock_forward_nchw.1} parent=5 // pred_region
      _
    $region28: #{flatblock_forward_nchw.1} parent=5 // pred_fallthru
      _
    %p150 = scmp.le.s32.totalorder 1, %s9
    %p151 = scmp.lt.s32.totalorder %s9, 3
    %p152 = pnand %p150, %p151
    %p153 = pneg %p152
    // Predicated region
    $region29: #{flatblock_forward_nchw.1} parent=5 // pred_check
      _
    $region30: #{flatblock_forward_nchw.1} parent=5 // pred_check_branch
      %155 = sbr.rel (%p152) target = $region32
    $region31: #{flatblock_forward_nchw.1} parent=5 // pred_region
      %s156 = ssub.s32 %s9, 1
      %s157 = smul.u32 2, %s18
      %p158 = scmp.lt.s32.totalorder %s157, 1
      %s159 = scalar_select %p158, %s157, 1
      %s160 = smul.addr %s159, 2
      %s161 = smul.addr %s160, 8
      %s162 = scalar_lea.vmem %s0, %s161
      %p163 = pneg %p47
      %p164 = pneg %p44
      %p165 = pneg %p68
      %p166 = pneg %p65
      %p167 = pneg %p89
      %p168 = pneg %p86
      %p169 = pneg %p115
      %p170 = pneg %p112
      %s171 = smul.u32 2, %s18
      %p172 = scmp.lt.s32.totalorder %s171, 1
      %s173 = scalar_select %p172, %s171, 1
      %s174 = smul.addr %s173, 2
      %s175 = smul.addr %s174, 8
      %s176 = scalar_lea.vmem %s3, %s175
      %s177 = smul.u32 2, %s18
      %p178 = scmp.lt.s32.totalorder %s177, 1
      %s179 = scalar_select %p178, %s177, 1
      %s180 = smul.addr %s179, 2
      %s181 = smul.addr %s180, 8
      %s182 = scalar_lea.vmem %s0, %s181
      %s183 = smul.u32 2, %s18
      %s184 = smul.u32 2, %s18
      %p185 = scmp.lt.s32.totalorder %s184, 1
      %s186 = scalar_select %p185, %s184, 1
      %s187 = smul.addr %s186, 2
      %s188 = smul.addr %s187, 8
      %s189 = scalar_lea.vmem %s3, %s188
      %s190 = smul.u32 2, %s18
      %p192 = scmp.eq.s32.totalorder %s19, 0
      // Predicated region
      $region33: #{flatblock_forward_nchw.1} parent=31 // pred_check
        %p193 = pneg %p192
      $region34: #{flatblock_forward_nchw.1} parent=31 // pred_check_branch
        %195 = sbr.rel (%p193) target = $region36
      $region35: #{flatblock_forward_nchw.1} parent=31 // pred_region
        %196 = vst [vmem:[#allocation2] sm:$0xff] 0.0
        %197 = vst [vmem:[#allocation2 + $0x8] sm:$0xff] 0.0
        %198 = vst [vmem:[#allocation2 + $0x10] sm:$0xff] 0.0
        %199 = vst [vmem:[#allocation2 + $0x18] sm:$0xff] 0.0
        %200 = vst [vmem:[#allocation2 + $0x20] sm:$0xf] 0.0
        %201 = vst [vmem:[#allocation4] sm:$0xf] 0
        %202 = vst [vmem:[#allocation4 + $0x4] sm:$0xf] 0
        %203 = vst [vmem:[#allocation4 + $0x8] sm:$0xf] 0
        %204 = vst [vmem:[#allocation4 + $0xc] sm:$0xf] 0
        %205 = vst [vmem:[#allocation4 + $0x10] sm:$0x3] 0
        %v206 = vld [vmem:[%s182] sm:$0xff]
        %v207 = vld [vmem:[%s182 + $0x8] sm:$0xff]
        %208 = vst [vmem:[#allocation2 + $0x1] sm:$0xff] %v206
        %209 = vst [vmem:[#allocation2 + $0x9] sm:$0xff] %v207
        %s210 = scalar_lea.vmem %s182, 16
        %v211 = vld [vmem:[%s210] sm:$0xff]
        %v212 = vld [vmem:[%s210 + $0x8] sm:$0xff]
        %213 = vst [vmem:[#allocation2 + $0x13] sm:$0xff] %v211
        %214 = vst [vmem:[#allocation2 + $0x1b] sm:$0xff] %v212
      $region36: #{flatblock_forward_nchw.1} parent=31 // pred_fallthru
        _
      %v215 = vlaneseq
      %v216 = vshrl.u32 %v215, 7
      %v217 = vadd.s32 %v216, 8
      %v218 = vadd.s32 %v216, 16
      %v219 = vadd.s32 %v216, 24
      %v220 = vadd.s32 %v216, 32
      %v221 = vadd.s32 %v216, 1
      %v222 = vadd.s32 %v217, 1
      %v223 = vadd.s32 %v218, 1
      %v224 = vadd.s32 %v219, 1
      %v225 = vadd.s32 %v220, 1
      %vm226 = vcmp.lt.s32.totalorder %v221, 0
      %v227 = vsub.s32 0, %v221
      %v228 = vsel %vm226, %v227, %v221
      %v229 = vand.u32 %v228, 65535
      %v230 = vshrl.u32 %v228, 16
      %v232 = vmul.u32 %v229, 14564
      %v233 = vmul.u32 %v229, 58254
      %v234 = vmul.u32 %v230, 14564
      %v235 = vmul.u32 %v230, 58254
      %v236 = vshll.u32 %v233, 16
      %v237 = vshrl.u32 %v233, 16
      %v238 = vshll.u32 %v234, 16
      %v239 = vshrl.u32 %v234, 16
      %vm240 = vc.u32 %v232, %v236
      %v241 = vsel %vm240, 1, 0
      %v242 = vadd.s32 %v232, %v236
      %v243 = vadd.s32 %v235, %v241
      %vm244 = vc.u32 %v242, %v238
      %v245 = vsel %vm244, 1, 0
      %v246 = vadd.s32 %v242, %v238
      %v247 = vadd.s32 %v243, %v245
      %v248 = vadd.s32 %v247, %v237
      %v249 = vadd.s32 %v248, %v239
      %v250 = vshrl.u32 %v249, 4
      %v251 = vmul.u32 %v250, 18
      %v252 = vsub.s32 %v228, %v251
      %v253 = vsub.s32 0, %v252
      %v254 = vsel %vm226, %v253, %v252
      %vm255 = vcmp.lt.s32.totalorder %v222, 0
      %v256 = vsub.s32 0, %v222
      %v257 = vsel %vm255, %v256, %v222
      %v258 = vand.u32 %v257, 65535
      %v259 = vshrl.u32 %v257, 16
      %v261 = vmul.u32 %v258, 14564
      %v262 = vmul.u32 %v258, 58254
      %v263 = vmul.u32 %v259, 14564
      %v264 = vmul.u32 %v259, 58254
      %v265 = vshll.u32 %v262, 16
      %v266 = vshrl.u32 %v262, 16
      %v267 = vshll.u32 %v263, 16
      %v268 = vshrl.u32 %v263, 16
      %vm269 = vc.u32 %v261, %v265
      %v270 = vsel %vm269, 1, 0
      %v271 = vadd.s32 %v261, %v265
      %v272 = vadd.s32 %v264, %v270
      %vm273 = vc.u32 %v271, %v267
      %v274 = vsel %vm273, 1, 0
      %v275 = vadd.s32 %v271, %v267
      %v276 = vadd.s32 %v272, %v274
      %v277 = vadd.s32 %v276, %v266
      %v278 = vadd.s32 %v277, %v268
      %v279 = vshrl.u32 %v278, 4
      %v280 = vmul.u32 %v279, 18
      %v281 = vsub.s32 %v257, %v280
      %v282 = vsub.s32 0, %v281
      %v283 = vsel %vm255, %v282, %v281
      %vm284 = vcmp.lt.s32.totalorder %v223, 0
      %v285 = vsub.s32 0, %v223
      %v286 = vsel %vm284, %v285, %v223
      %v287 = vand.u32 %v286, 65535
      %v288 = vshrl.u32 %v286, 16
      %v290 = vmul.u32 %v287, 14564
      %v291 = vmul.u32 %v287, 58254
      %v292 = vmul.u32 %v288, 14564
      %v293 = vmul.u32 %v288, 58254
      %v294 = vshll.u32 %v291, 16
      %v295 = vshrl.u32 %v291, 16
      %v296 = vshll.u32 %v292, 16
      %v297 = vshrl.u32 %v292, 16
      %vm298 = vc.u32 %v290, %v294
      %v299 = vsel %vm298, 1, 0
      %v300 = vadd.s32 %v290, %v294
      %v301 = vadd.s32 %v293, %v299
      %vm302 = vc.u32 %v300, %v296
      %v303 = vsel %vm302, 1, 0
      %v304 = vadd.s32 %v300, %v296
      %v305 = vadd.s32 %v301, %v303
      %v306 = vadd.s32 %v305, %v295
      %v307 = vadd.s32 %v306, %v297
      %v308 = vshrl.u32 %v307, 4
      %v309 = vmul.u32 %v308, 18
      %v310 = vsub.s32 %v286, %v309
      %v311 = vsub.s32 0, %v310
      %v312 = vsel %vm284, %v311, %v310
      %vm313 = vcmp.lt.s32.totalorder %v224, 0
      %v314 = vsub.s32 0, %v224
      %v315 = vsel %vm313, %v314, %v224
      %v316 = vand.u32 %v315, 65535
      %v317 = vshrl.u32 %v315, 16
      %v319 = vmul.u32 %v316, 14564
      %v320 = vmul.u32 %v316, 58254
      %v321 = vmul.u32 %v317, 14564
      %v322 = vmul.u32 %v317, 58254
      %v323 = vshll.u32 %v320, 16
      %v324 = vshrl.u32 %v320, 16
      %v325 = vshll.u32 %v321, 16
      %v326 = vshrl.u32 %v321, 16
      %vm327 = vc.u32 %v319, %v323
      %v328 = vsel %vm327, 1, 0
      %v329 = vadd.s32 %v319, %v323
      %v330 = vadd.s32 %v322, %v328
      %vm331 = vc.u32 %v329, %v325
      %v332 = vsel %vm331, 1, 0
      %v333 = vadd.s32 %v329, %v325
      %v334 = vadd.s32 %v330, %v332
      %v335 = vadd.s32 %v334, %v324
      %v336 = vadd.s32 %v335, %v326
      %v337 = vshrl.u32 %v336, 4
      %v338 = vmul.u32 %v337, 18
      %v339 = vsub.s32 %v315, %v338
      %v340 = vsub.s32 0, %v339
      %v341 = vsel %vm313, %v340, %v339
      %vm342 = vcmp.lt.s32.totalorder %v225, 0
      %v343 = vsub.s32 0, %v225
      %v344 = vsel %vm342, %v343, %v225
      %v345 = vand.u32 %v344, 65535
      %v346 = vshrl.u32 %v344, 16
      %v348 = vmul.u32 %v345, 14564
      %v349 = vmul.u32 %v345, 58254
      %v350 = vmul.u32 %v346, 14564
      %v351 = vmul.u32 %v346, 58254
      %v352 = vshll.u32 %v349, 16
      %v353 = vshrl.u32 %v349, 16
      %v354 = vshll.u32 %v350, 16
      %v355 = vshrl.u32 %v350, 16
      %vm356 = vc.u32 %v348, %v352
      %v357 = vsel %vm356, 1, 0
      %v358 = vadd.s32 %v348, %v352
      %v359 = vadd.s32 %v351, %v357
      %vm360 = vc.u32 %v358, %v354
      %v361 = vsel %vm360, 1, 0
      %v362 = vadd.s32 %v358, %v354
      %v363 = vadd.s32 %v359, %v361
      %v364 = vadd.s32 %v363, %v353
      %v365 = vadd.s32 %v364, %v355
      %v366 = vshrl.u32 %v365, 4
      %v367 = vmul.u32 %v366, 18
      %v368 = vsub.s32 %v344, %v367
      %v369 = vsub.s32 0, %v368
      %v370 = vsel %vm342, %v369, %v368
      %vm371 = vcmp.ne.s32.totalorder %v254, 0
      %vm372 = vcmp.ne.s32.totalorder %v283, 0
      %vm373 = vcmp.ne.s32.totalorder %v312, 0
      %vm374 = vcmp.ne.s32.totalorder %v341, 0
      %vm375 = vcmp.ne.s32.totalorder %v370, 0
      %vm376 = vcmp.lt.s32.totalorder %v254, 0
      %vm377 = vcmp.lt.s32.totalorder %v283, 0
      %vm378 = vcmp.lt.s32.totalorder %v312, 0
      %vm379 = vcmp.lt.s32.totalorder %v341, 0
      %vm380 = vcmp.lt.s32.totalorder %v370, 0
      %vm381 = vmand %vm376, %vm371
      %vm382 = vmand %vm377, %vm372
      %vm383 = vmand %vm378, %vm373
      %vm384 = vmand %vm379, %vm374
      %vm385 = vmand %vm380, %vm375
      %v386 = vadd.s32 %v254, 18
      %v387 = vadd.s32 %v283, 18
      %v388 = vadd.s32 %v312, 18
      %v389 = vadd.s32 %v341, 18
      %v390 = vadd.s32 %v370, 18
      %v391 = vsel %vm381, %v386, %v254
      %v392 = vsel %vm382, %v387, %v283
      %v393 = vsel %vm383, %v388, %v312
      %v394 = vsel %vm384, %v389, %v341
      %v395 = vsel %vm385, %v390, %v370
      %vm396 = vcmp.ge.s32.totalorder %v391, 1
      %vm397 = vcmp.ge.s32.totalorder %v392, 1
      %vm398 = vcmp.ge.s32.totalorder %v393, 1
      %vm399 = vcmp.ge.s32.totalorder %v394, 1
      %vm400 = vcmp.ge.s32.totalorder %v395, 1
      %vm401 = vcmp.le.s32.totalorder %v391, 16
      %vm402 = vcmp.le.s32.totalorder %v392, 16
      %vm403 = vcmp.le.s32.totalorder %v393, 16
      %vm404 = vcmp.le.s32.totalorder %v394, 16
      %vm405 = vcmp.le.s32.totalorder %v395, 16
      %vm406 = vmand %vm396, %vm401
      %vm407 = vmand %vm397, %vm402
      %vm408 = vmand %vm398, %vm403
      %vm409 = vmand %vm399, %vm404
      %vm410 = vmand %vm400, %vm405
      %v411 = vsel %vm406, 1, 0
      %v412 = vsel %vm407, 1, 0
      %v413 = vsel %vm408, 1, 0
      %v414 = vsel %vm409, 1, 0
      %v415 = vsel %vm410, 1, 0
      %v416 = vcvt.s32.f32 %v411
      %v417 = vcvt.s32.f32 %v412
      %v418 = vcvt.s32.f32 %v413
      %v419 = vcvt.s32.f32 %v414
      %v420 = vcvt.s32.f32 %v415
      %s421 = smul.u32 %s19, 2
      %s422 = scalar_lea.vmem %s2, %s421
      %v423 = vld [vmem:[%s422] sm:$0x3]
      %v424 = vld [vmem:[#allocation2] sm:$0xff]
      %v425 = vld [vmem:[#allocation2 + $0x8] sm:$0xff]
      %v426 = vld [vmem:[#allocation2 + $0x10] sm:$0xff]
      %v427 = vld [vmem:[#allocation2 + $0x18] sm:$0xff]
      %v428 = vld [vmem:[#allocation2 + $0x20] sm:$0xf]
      %v429 = vpack.c.bf16 %v424, %v424
      %v430 = vpack.c.bf16 %v425, %v425
      %v431 = vpack.c.bf16 %v426, %v426
      %v432 = vpack.c.bf16 %v427, %v427
      %v433 = vpack.c.bf16 %v428, %v428
      %434 = vst [vmem:[#allocation3] sm:$0xf] %v429
      %435 = vst [vmem:[#allocation3 + $0x4] sm:$0xf] %v430
      %436 = vst [vmem:[#allocation3 + $0x8] sm:$0xf] %v431
      %437 = vst [vmem:[#allocation3 + $0xc] sm:$0xf] %v432
      %438 = vst [vmem:[#allocation3 + $0x10] sm:$0x3] %v433
      %v439 = vld [vmem:[#allocation3] sm:$0xf]
      %v440 = vld [vmem:[#allocation3 + $0x4] sm:$0xf]
      %v441 = vld [vmem:[#allocation3 + $0x8] sm:$0xf]
      %v442 = vld [vmem:[#allocation3 + $0xc] sm:$0xf]
      %v443 = vld [vmem:[#allocation3 + $0x10] sm:$0x1]
      %s444 = smul.u32 %s19, 96
      %s445 = smul.addr %s444, 4
      %s446 = scalar_lea.vmem %s1, %s445
      %v447 = vld [vmem:[%s446] sm:$0xf]
      %v448 = vld [vmem:[%s446 + $0x4] sm:$0xf]
      %v449 = vld [vmem:[%s446 + $0x8] sm:$0xf]
      %v450 = vld [vmem:[%s446 + $0xc] sm:$0xf]
      %v451 = vld [vmem:[%s446 + $0x10] sm:$0xf]
      %v452 = vld [vmem:[%s446 + $0x14] sm:$0xf]
      %v453 = vld [vmem:[%s446 + $0x18] sm:$0xf]
      %v454 = vld [vmem:[%s446 + $0x1c] sm:$0xf]
      %v455 = vld [vmem:[%s446 + $0x20] sm:$0xf]
      %v456 = vld [vmem:[%s446 + $0x24] sm:$0xf]
      %v457 = vld [vmem:[%s446 + $0x28] sm:$0xf]
      %v458 = vld [vmem:[%s446 + $0x2c] sm:$0xf]
      %v459 = vld [vmem:[%s446 + $0x30] sm:$0xf]
      %v460 = vld [vmem:[%s446 + $0x34] sm:$0xf]
      %v461 = vld [vmem:[%s446 + $0x38] sm:$0xf]
      %v462 = vld [vmem:[%s446 + $0x3c] sm:$0xf]
      %v463 = vld [vmem:[#allocation3 + $0x10] sm:$0x3]
      %s464 = sadd.s32 16, %s444
      %s465 = smul.addr %s464, 4
      %s466 = scalar_lea.vmem %s1, %s465
      %v467 = vld [vmem:[%s466] sm:$0xf]
      %v468 = vld [vmem:[%s466 + $0x4] sm:$0xf]
      %v469 = vld [vmem:[%s466 + $0x8] sm:$0xf]
      %v470 = vld [vmem:[%s466 + $0xc] sm:$0xf]
      %v471 = vld [vmem:[%s466 + $0x10] sm:$0xf]
      %v472 = vld [vmem:[%s466 + $0x14] sm:$0xf]
      %v473 = vld [vmem:[%s466 + $0x18] sm:$0xf]
      %v474 = vld [vmem:[%s466 + $0x1c] sm:$0xf]
      %v475 = vld [vmem:[%s466 + $0x20] sm:$0xf]
      %v476 = vld [vmem:[%s466 + $0x24] sm:$0xf]
      %v477 = vld [vmem:[%s466 + $0x28] sm:$0xf]
      %v478 = vld [vmem:[%s466 + $0x2c] sm:$0xf]
      %v479 = vld [vmem:[%s466 + $0x30] sm:$0xf]
      %v480 = vld [vmem:[%s466 + $0x34] sm:$0xf]
      %v481 = vld [vmem:[%s466 + $0x38] sm:$0xf]
      %v482 = vld [vmem:[%s466 + $0x3c] sm:$0xf]
      %v488 = vunpack.c.l.b16 %v439
      %v489 = vunpack.c.l.b16 %v440
      %v490 = vunpack.c.l.b16 %v441
      %v491 = vunpack.c.l.b16 %v442
      %v492 = vunpack.c.l.b16 %v463
      %v493 = vpack.c.b16 %v489, %v488
      %v494 = vpack.c.b16 %v491, %v490
      %v495 = vpack.c.b16 %v492, %v492
      %vm496 = vsmask.f32 7424
      %v498 = vshrl.u32 %v493, 16
      %v500 = vshll.u32 %v493, 16
      %v502 = vrot.slane %v500, 1
      %v503 = vor.u32 %v498, %v502
      %v505 = vshll.u32 %v494, 16
      %v507 = vrot.slane %v505, 1
      %v508 = vsel %vm496, %v503, %v507
      %v509 = vshrl.u32 %v494, 16
      %v511 = vor.u32 %v509, %v507
      %v513 = vshll.u32 %v495, 16
      %v515 = vrot.slane %v513, 1
      %v516 = vsel %vm496, %v511, %v515
      %v517 = vshrl.u32 %v495, 16
      %v519 = vor.u32 %v517, %v515
      %v539 = vunpack.c.l.b16 %v467
      %v540 = vunpack.c.l.b16 %v468
      %v541 = vunpack.c.l.b16 %v469
      %v542 = vunpack.c.l.b16 %v470
      %v543 = vunpack.c.l.b16 %v471
      %v544 = vunpack.c.l.b16 %v472
      %v545 = vunpack.c.l.b16 %v473
      %v546 = vunpack.c.l.b16 %v474
      %v547 = vunpack.c.l.b16 %v475
      %v548 = vunpack.c.l.b16 %v476
      %v549 = vunpack.c.l.b16 %v477
      %v550 = vunpack.c.l.b16 %v478
      %v551 = vunpack.c.l.b16 %v479
      %v552 = vunpack.c.l.b16 %v480
      %v553 = vunpack.c.l.b16 %v481
      %v554 = vunpack.c.l.b16 %v482
      %v555 = vpack.c.b16 %v540, %v539
      %v556 = vpack.c.b16 %v542, %v541
      %v557 = vpack.c.b16 %v544, %v543
      %v558 = vpack.c.b16 %v546, %v545
      %v559 = vpack.c.b16 %v548, %v547
      %v560 = vpack.c.b16 %v550, %v549
      %v561 = vpack.c.b16 %v552, %v551
      %v562 = vpack.c.b16 %v554, %v553
      %571 = vmatpush.bf16.msra.mxu0 %v562
      %572 = vmatpush.bf16.msra.mxu0 %v561
      %573 = vmatpush.bf16.msra.mxu0 %v560
      %574 = vmatpush.bf16.msra.mxu0 %v559
      %575 = vmatpush.bf16.msra.mxu0 %v558
      %576 = vmatpush.bf16.msra.mxu0 %v557
      %577 = vmatpush.bf16.msra.mxu0 %v556
      %578 = vmatpush.bf16.msra.mxu0 %v555
      %579 = vmatmul.bf16.gmra.mxu0 %v508
      %v580 = vpop.f32.mrf.mxu0
      %v581 = vadd.f32 0.0, %v580
      %v582 = vpop.f32.mrf.mxu0
      %v583 = vadd.f32 0.0, %v582
      %584 = vmatmul.bf16.gmra.mxu0 %v516
      %v585 = vpop.f32.mrf.mxu0
      %v586 = vadd.f32 0.0, %v585
      %v587 = vpop.f32.mrf.mxu0
      %v588 = vadd.f32 0.0, %v587
      %589 = vmatmul.bf16.gmra.mxu0 %v519
      %v590 = vpop.f32.mrf.mxu0
      %v591 = vadd.f32 0.0, %v590
      %v592 = vpop.f32.mrf.mxu0
      %593 = vdwg.mxu0
      %v595 = vunpack.c.l.b16 %v443
      %v596 = vpack.c.b16 %v595, %v595
      %v616 = vunpack.c.l.b16 %v447
      %v617 = vunpack.c.l.b16 %v448
      %v618 = vunpack.c.l.b16 %v449
      %v619 = vunpack.c.l.b16 %v450
      %v620 = vunpack.c.l.b16 %v451
      %v621 = vunpack.c.l.b16 %v452
      %v622 = vunpack.c.l.b16 %v453
      %v623 = vunpack.c.l.b16 %v454
      %v624 = vunpack.c.l.b16 %v455
      %v625 = vunpack.c.l.b16 %v456
      %v626 = vunpack.c.l.b16 %v457
      %v627 = vunpack.c.l.b16 %v458
      %v628 = vunpack.c.l.b16 %v459
      %v629 = vunpack.c.l.b16 %v460
      %v630 = vunpack.c.l.b16 %v461
      %v631 = vunpack.c.l.b16 %v462
      %v632 = vpack.c.b16 %v617, %v616
      %v633 = vpack.c.b16 %v619, %v618
      %v634 = vpack.c.b16 %v621, %v620
      %v635 = vpack.c.b16 %v623, %v622
      %v636 = vpack.c.b16 %v625, %v624
      %v637 = vpack.c.b16 %v627, %v626
      %v638 = vpack.c.b16 %v629, %v628
      %v639 = vpack.c.b16 %v631, %v630
      %648 = vmatpush.bf16.msra.mxu0 %v639
      %649 = vmatpush.bf16.msra.mxu0 %v638
      %650 = vmatpush.bf16.msra.mxu0 %v637
      %651 = vmatpush.bf16.msra.mxu0 %v636
      %652 = vmatpush.bf16.msra.mxu0 %v635
      %653 = vmatpush.bf16.msra.mxu0 %v634
      %654 = vmatpush.bf16.msra.mxu0 %v633
      %655 = vmatpush.bf16.msra.mxu0 %v632
      %656 = vmatmul.bf16.gmra.mxu0 %v493
      %v657 = vpop.f32.mrf.mxu0
      %v658 = vadd.f32 %v581, %v657
      %v659 = vpop.f32.mrf.mxu0
      %v660 = vadd.f32 %v583, %v659
      %661 = vmatmul.bf16.gmra.mxu0 %v494
      %v662 = vpop.f32.mrf.mxu0
      %v663 = vadd.f32 %v586, %v662
      %v664 = vpop.f32.mrf.mxu0
      %v665 = vadd.f32 %v588, %v664
      %666 = vmatmul.bf16.gmra.mxu0 %v596
      %v667 = vpop.f32.mrf.mxu0
      %v668 = vadd.f32 %v591, %v667
      %v669 = vpop.f32.mrf.mxu0
      %670 = vdwg.mxu0
      %v671 = vld [vmem:[#allocation3] sm:$0xe]
      %s672 = sadd.s32 32, %s444
      %s673 = smul.addr %s672, 4
      %s674 = scalar_lea.vmem %s1, %s673
      %v675 = vld [vmem:[%s674] sm:$0xf]
      %v676 = vld [vmem:[%s674 + $0x4] sm:$0xf]
      %v677 = vld [vmem:[%s674 + $0x8] sm:$0xf]
      %v678 = vld [vmem:[%s674 + $0xc] sm:$0xf]
      %v679 = vld [vmem:[%s674 + $0x10] sm:$0xf]
      %v680 = vld [vmem:[%s674 + $0x14] sm:$0xf]
      %v681 = vld [vmem:[%s674 + $0x18] sm:$0xf]
      %v682 = vld [vmem:[%s674 + $0x1c] sm:$0xf]
      %v683 = vld [vmem:[%s674 + $0x20] sm:$0xf]
      %v684 = vld [vmem:[%s674 + $0x24] sm:$0xf]
      %v685 = vld [vmem:[%s674 + $0x28] sm:$0xf]
      %v686 = vld [vmem:[%s674 + $0x2c] sm:$0xf]
      %v687 = vld [vmem:[%s674 + $0x30] sm:$0xf]
      %v688 = vld [vmem:[%s674 + $0x34] sm:$0xf]
      %v689 = vld [vmem:[%s674 + $0x38] sm:$0xf]
      %v690 = vld [vmem:[%s674 + $0x3c] sm:$0xf]
      %v692 = vunpack.c.l.b16 %v671
      %v693 = vpack.c.b16 %v489, %v692
      %vm694 = vcmask 1046528
      %v695 = vrot.slane %v693, 1
      %v696 = vrot.slane %v494, 1
      %v697 = vsel %vm694, %v695, %v696
      %v698 = vrot.slane %v495, 1
      %v699 = vsel %vm694, %v696, %v698
      %v719 = vunpack.c.l.b16 %v675
      %v720 = vunpack.c.l.b16 %v676
      %v721 = vunpack.c.l.b16 %v677
      %v722 = vunpack.c.l.b16 %v678
      %v723 = vunpack.c.l.b16 %v679
      %v724 = vunpack.c.l.b16 %v680
      %v725 = vunpack.c.l.b16 %v681
      %v726 = vunpack.c.l.b16 %v682
      %v727 = vunpack.c.l.b16 %v683
      %v728 = vunpack.c.l.b16 %v684
      %v729 = vunpack.c.l.b16 %v685
      %v730 = vunpack.c.l.b16 %v686
      %v731 = vunpack.c.l.b16 %v687
      %v732 = vunpack.c.l.b16 %v688
      %v733 = vunpack.c.l.b16 %v689
      %v734 = vunpack.c.l.b16 %v690
      %v735 = vpack.c.b16 %v720, %v719
      %v736 = vpack.c.b16 %v722, %v721
      %v737 = vpack.c.b16 %v724, %v723
      %v738 = vpack.c.b16 %v726, %v725
      %v739 = vpack.c.b16 %v728, %v727
      %v740 = vpack.c.b16 %v730, %v729
      %v741 = vpack.c.b16 %v732, %v731
      %v742 = vpack.c.b16 %v734, %v733
      %751 = vmatpush.bf16.msra.mxu0 %v742
      %752 = vmatpush.bf16.msra.mxu0 %v741
      %753 = vmatpush.bf16.msra.mxu0 %v740
      %754 = vmatpush.bf16.msra.mxu0 %v739
      %755 = vmatpush.bf16.msra.mxu0 %v738
      %756 = vmatpush.bf16.msra.mxu0 %v737
      %757 = vmatpush.bf16.msra.mxu0 %v736
      %758 = vmatpush.bf16.msra.mxu0 %v735
      %759 = vmatmul.bf16.gmra.mxu0 %v697
      %v760 = vpop.f32.mrf.mxu0
      %v761 = vadd.f32 0.0, %v760
      %v762 = vpop.f32.mrf.mxu0
      %v763 = vadd.f32 0.0, %v762
      %764 = vmatmul.bf16.gmra.mxu0 %v699
      %v765 = vpop.f32.mrf.mxu0
      %v766 = vadd.f32 0.0, %v765
      %v767 = vpop.f32.mrf.mxu0
      %v768 = vadd.f32 0.0, %v767
      %769 = vmatmul.bf16.gmra.mxu0 %v698
      %v770 = vpop.f32.mrf.mxu0
      %v771 = vadd.f32 0.0, %v770
      %v772 = vpop.f32.mrf.mxu0
      %773 = vdwg.mxu0
      %v774 = vadd.f32 %v658, %v761
      %v775 = vadd.f32 %v660, %v763
      %v776 = vadd.f32 %v663, %v766
      %v777 = vadd.f32 %v665, %v768
      %v778 = vadd.f32 %v668, %v771
      %v779 = vperm.slane %v423, 0
      %v780 = vadd.f32 %v774, %v779
      %v781 = vadd.f32 %v775, %v779
      %v782 = vadd.f32 %v776, %v779
      %v783 = vadd.f32 %v777, %v779
      %v784 = vadd.f32 %v778, %v779
      %v785 = vmax.f32 %v780, 0.0
      %v786 = vmax.f32 %v781, 0.0
      %v787 = vmax.f32 %v782, 0.0
      %v788 = vmax.f32 %v783, 0.0
      %v789 = vmax.f32 %v784, 0.0
      %v790 = vmul.f32 %v416, %v785
      %v791 = vmul.f32 %v417, %v786
      %v792 = vmul.f32 %v418, %v787
      %v793 = vmul.f32 %v419, %v788
      %v794 = vmul.f32 %v420, %v789
      %v795 = vpack.c.bf16 %v790, %v790
      %v796 = vpack.c.bf16 %v791, %v791
      %v797 = vpack.c.bf16 %v792, %v792
      %v798 = vpack.c.bf16 %v793, %v793
      %v799 = vpack.c.bf16 %v794, %v794
      %vm800 = vsmask.f32 256
      %vm801 = vsmask.f32 4368
      %vm802 = vmor %vm800, %vm801
      %v804 = vshrl.u32 %v795, 16
      %v806 = vrot.slane %v804, 7
      %v807 = vshll.u32 %v795, 16
      %v809 = vor.u32 %v806, %v807
      %v810 = vrot.slane %v806, 4
      %v812 = vshrl.u32 %v796, 16
      %v814 = vrot.slane %v812, 7
      %v815 = vshll.u32 %v796, 16
      %v817 = vor.u32 %v814, %v815
      %v818 = vsel %vm802, %v810, %v817
      %v819 = vrot.slane %v814, 4
      %v821 = vshrl.u32 %v797, 16
      %v823 = vrot.slane %v821, 7
      %v824 = vshll.u32 %v797, 16
      %v826 = vor.u32 %v823, %v824
      %v827 = vsel %vm802, %v819, %v826
      %v828 = vrot.slane %v823, 4
      %v830 = vshrl.u32 %v798, 16
      %v832 = vrot.slane %v830, 7
      %v833 = vshll.u32 %v798, 16
      %v835 = vor.u32 %v832, %v833
      %v836 = vsel %vm802, %v828, %v835
      %v837 = vrot.slane %v832, 4
      %v839 = vshrl.u32 %v799, 16
      %v841 = vrot.slane %v839, 7
      %v842 = vshll.u32 %v799, 16
      %v844 = vor.u32 %v841, %v842
      %v845 = vsel %vm802, %v837, %v844
      %vm851 = vcmask 1043456
      %vm852 = vsmask.f32 7938
      %vm853 = vmand %vm851, %vm852
      %v854 = vld [vmem:[#allocation4] sm:$0xf]
      %v855 = vsel %vm853, %v809, %v854
      %856 = vst [vmem:[#allocation4] sm:$0xf] %v855
      %857 = vst [vmem:[#allocation4 + $0x4] sm:$0xf] %v818
      %858 = vst [vmem:[#allocation4 + $0x8] sm:$0xf] %v827
      %859 = vst [vmem:[#allocation4 + $0xc] sm:$0xf] %v836
      %vm860 = vcmask 1041408
      %vm861 = vsmask.f32 1280
      %vm862 = vmand %vm860, %vm861
      %v863 = vld [vmem:[#allocation4 + $0x10] sm:$0x3]
      %v864 = vsel %vm862, %v845, %v863
      %865 = vst [vmem:[#allocation4 + $0x10] sm:$0x3] %v864
      %v866 = vld [vmem:[#allocation4] sm:$0xf]
      %v867 = vld [vmem:[#allocation4 + $0x4] sm:$0xf]
      %v868 = vld [vmem:[#allocation4 + $0x8] sm:$0xf]
      %v869 = vld [vmem:[#allocation4 + $0xc] sm:$0xf]
      %v870 = vld [vmem:[#allocation4 + $0x10] sm:$0x1]
      %s871 = sadd.s32 48, %s444
      %s872 = smul.addr %s871, 4
      %s873 = scalar_lea.vmem %s1, %s872
      %v874 = vld [vmem:[%s873] sm:$0xf]
      %v875 = vld [vmem:[%s873 + $0x4] sm:$0xf]
      %v876 = vld [vmem:[%s873 + $0x8] sm:$0xf]
      %v877 = vld [vmem:[%s873 + $0xc] sm:$0xf]
      %v878 = vld [vmem:[%s873 + $0x10] sm:$0xf]
      %v879 = vld [vmem:[%s873 + $0x14] sm:$0xf]
      %v880 = vld [vmem:[%s873 + $0x18] sm:$0xf]
      %v881 = vld [vmem:[%s873 + $0x1c] sm:$0xf]
      %v882 = vld [vmem:[%s873 + $0x20] sm:$0xf]
      %v883 = vld [vmem:[%s873 + $0x24] sm:$0xf]
      %v884 = vld [vmem:[%s873 + $0x28] sm:$0xf]
      %v885 = vld [vmem:[%s873 + $0x2c] sm:$0xf]
      %v886 = vld [vmem:[%s873 + $0x30] sm:$0xf]
      %v887 = vld [vmem:[%s873 + $0x34] sm:$0xf]
      %v888 = vld [vmem:[%s873 + $0x38] sm:$0xf]
      %v889 = vld [vmem:[%s873 + $0x3c] sm:$0xf]
      %v890 = vld [vmem:[#allocation4 + $0x10] sm:$0x3]
      %s891 = sadd.s32 64, %s444
      %s892 = smul.addr %s891, 4
      %s893 = scalar_lea.vmem %s1, %s892
      %v894 = vld [vmem:[%s893] sm:$0xf]
      %v895 = vld [vmem:[%s893 + $0x4] sm:$0xf]
      %v896 = vld [vmem:[%s893 + $0x8] sm:$0xf]
      %v897 = vld [vmem:[%s893 + $0xc] sm:$0xf]
      %v898 = vld [vmem:[%s893 + $0x10] sm:$0xf]
      %v899 = vld [vmem:[%s893 + $0x14] sm:$0xf]
      %v900 = vld [vmem:[%s893 + $0x18] sm:$0xf]
      %v901 = vld [vmem:[%s893 + $0x1c] sm:$0xf]
      %v902 = vld [vmem:[%s893 + $0x20] sm:$0xf]
      %v903 = vld [vmem:[%s893 + $0x24] sm:$0xf]
      %v904 = vld [vmem:[%s893 + $0x28] sm:$0xf]
      %v905 = vld [vmem:[%s893 + $0x2c] sm:$0xf]
      %v906 = vld [vmem:[%s893 + $0x30] sm:$0xf]
      %v907 = vld [vmem:[%s893 + $0x34] sm:$0xf]
      %v908 = vld [vmem:[%s893 + $0x38] sm:$0xf]
      %v909 = vld [vmem:[%s893 + $0x3c] sm:$0xf]
      %v915 = vunpack.c.l.b16 %v866
      %v916 = vunpack.c.l.b16 %v867
      %v917 = vunpack.c.l.b16 %v868
      %v918 = vunpack.c.l.b16 %v869
      %v919 = vunpack.c.l.b16 %v890
      %v920 = vpack.c.b16 %v916, %v915
      %v921 = vpack.c.b16 %v918, %v917
      %v922 = vpack.c.b16 %v919, %v919
      %v924 = vshrl.u32 %v920, 16
      %v926 = vshll.u32 %v920, 16
      %v928 = vrot.slane %v926, 1
      %v929 = vor.u32 %v924, %v928
      %v931 = vshll.u32 %v921, 16
      %v933 = vrot.slane %v931, 1
      %v934 = vsel %vm496, %v929, %v933
      %v935 = vshrl.u32 %v921, 16
      %v937 = vor.u32 %v935, %v933
      %v939 = vshll.u32 %v922, 16
      %v941 = vrot.slane %v939, 1
      %v942 = vsel %vm496, %v937, %v941
      %v943 = vshrl.u32 %v922, 16
      %v945 = vor.u32 %v943, %v941
      %v965 = vunpack.c.l.b16 %v894
      %v966 = vunpack.c.l.b16 %v895
      %v967 = vunpack.c.l.b16 %v896
      %v968 = vunpack.c.l.b16 %v897
      %v969 = vunpack.c.l.b16 %v898
      %v970 = vunpack.c.l.b16 %v899
      %v971 = vunpack.c.l.b16 %v900
      %v972 = vunpack.c.l.b16 %v901
      %v973 = vunpack.c.l.b16 %v902
      %v974 = vunpack.c.l.b16 %v903
      %v975 = vunpack.c.l.b16 %v904
      %v976 = vunpack.c.l.b16 %v905
      %v977 = vunpack.c.l.b16 %v906
      %v978 = vunpack.c.l.b16 %v907
      %v979 = vunpack.c.l.b16 %v908
      %v980 = vunpack.c.l.b16 %v909
      %v981 = vpack.c.b16 %v966, %v965
      %v982 = vpack.c.b16 %v968, %v967
      %v983 = vpack.c.b16 %v970, %v969
      %v984 = vpack.c.b16 %v972, %v971
      %v985 = vpack.c.b16 %v974, %v973
      %v986 = vpack.c.b16 %v976, %v975
      %v987 = vpack.c.b16 %v978, %v977
      %v988 = vpack.c.b16 %v980, %v979
      %997 = vmatpush.bf16.msra.mxu0 %v988
      %998 = vmatpush.bf16.msra.mxu0 %v987
      %999 = vmatpush.bf16.msra.mxu0 %v986
      %1000 = vmatpush.bf16.msra.mxu0 %v985
      %1001 = vmatpush.bf16.msra.mxu0 %v984
      %1002 = vmatpush.bf16.msra.mxu0 %v983
      %1003 = vmatpush.bf16.msra.mxu0 %v982
      %1004 = vmatpush.bf16.msra.mxu0 %v981
      %1005 = vmatmul.bf16.gmra.mxu0 %v934
      %v1006 = vpop.f32.mrf.mxu0
      %v1007 = vadd.f32 0.0, %v1006
      %v1008 = vpop.f32.mrf.mxu0
      %v1009 = vadd.f32 0.0, %v1008
      %1010 = vmatmul.bf16.gmra.mxu0 %v942
      %v1011 = vpop.f32.mrf.mxu0
      %v1012 = vadd.f32 0.0, %v1011
      %v1013 = vpop.f32.mrf.mxu0
      %v1014 = vadd.f32 0.0, %v1013
      %1015 = vmatmul.bf16.gmra.mxu0 %v945
      %v1016 = vpop.f32.mrf.mxu0
      %v1017 = vadd.f32 0.0, %v1016
      %v1018 = vpop.f32.mrf.mxu0
      %1019 = vdwg.mxu0
      %v1021 = vunpack.c.l.b16 %v870
      %v1022 = vpack.c.b16 %v1021, %v1021
      %v1042 = vunpack.c.l.b16 %v874
      %v1043 = vunpack.c.l.b16 %v875
      %v1044 = vunpack.c.l.b16 %v876
      %v1045 = vunpack.c.l.b16 %v877
      %v1046 = vunpack.c.l.b16 %v878
      %v1047 = vunpack.c.l.b16 %v879
      %v1048 = vunpack.c.l.b16 %v880
      %v1049 = vunpack.c.l.b16 %v881
      %v1050 = vunpack.c.l.b16 %v882
      %v1051 = vunpack.c.l.b16 %v883
      %v1052 = vunpack.c.l.b16 %v884
      %v1053 = vunpack.c.l.b16 %v885
      %v1054 = vunpack.c.l.b16 %v886
      %v1055 = vunpack.c.l.b16 %v887
      %v1056 = vunpack.c.l.b16 %v888
      %v1057 = vunpack.c.l.b16 %v889
      %v1058 = vpack.c.b16 %v1043, %v1042
      %v1059 = vpack.c.b16 %v1045, %v1044
      %v1060 = vpack.c.b16 %v1047, %v1046
      %v1061 = vpack.c.b16 %v1049, %v1048
      %v1062 = vpack.c.b16 %v1051, %v1050
      %v1063 = vpack.c.b16 %v1053, %v1052
      %v1064 = vpack.c.b16 %v1055, %v1054
      %v1065 = vpack.c.b16 %v1057, %v1056
      %1074 = vmatpush.bf16.msra.mxu0 %v1065
      %1075 = vmatpush.bf16.msra.mxu0 %v1064
      %1076 = vmatpush.bf16.msra.mxu0 %v1063
      %1077 = vmatpush.bf16.msra.mxu0 %v1062
      %1078 = vmatpush.bf16.msra.mxu0 %v1061
      %1079 = vmatpush.bf16.msra.mxu0 %v1060
      %1080 = vmatpush.bf16.msra.mxu0 %v1059
      %1081 = vmatpush.bf16.msra.mxu0 %v1058
      %1082 = vmatmul.bf16.gmra.mxu0 %v920
      %v1083 = vpop.f32.mrf.mxu0
      %v1084 = vadd.f32 %v1007, %v1083
      %v1085 = vpop.f32.mrf.mxu0
      %v1086 = vadd.f32 %v1009, %v1085
      %1087 = vmatmul.bf16.gmra.mxu0 %v921
      %v1088 = vpop.f32.mrf.mxu0
      %v1089 = vadd.f32 %v1012, %v1088
      %v1090 = vpop.f32.mrf.mxu0
      %v1091 = vadd.f32 %v1014, %v1090
      %1092 = vmatmul.bf16.gmra.mxu0 %v1022
      %v1093 = vpop.f32.mrf.mxu0
      %v1094 = vadd.f32 %v1017, %v1093
      %v1095 = vpop.f32.mrf.mxu0
      %1096 = vdwg.mxu0
      %v1097 = vld [vmem:[#allocation4] sm:$0xe]
      %s1098 = sadd.s32 80, %s444
      %s1099 = smul.addr %s1098, 4
      %s1100 = scalar_lea.vmem %s1, %s1099
      %v1101 = vld [vmem:[%s1100] sm:$0xf]
      %v1102 = vld [vmem:[%s1100 + $0x4] sm:$0xf]
      %v1103 = vld [vmem:[%s1100 + $0x8] sm:$0xf]
      %v1104 = vld [vmem:[%s1100 + $0xc] sm:$0xf]
      %v1105 = vld [vmem:[%s1100 + $0x10] sm:$0xf]
      %v1106 = vld [vmem:[%s1100 + $0x14] sm:$0xf]
      %v1107 = vld [vmem:[%s1100 + $0x18] sm:$0xf]
      %v1108 = vld [vmem:[%s1100 + $0x1c] sm:$0xf]
      %v1109 = vld [vmem:[%s1100 + $0x20] sm:$0xf]
      %v1110 = vld [vmem:[%s1100 + $0x24] sm:$0xf]
      %v1111 = vld [vmem:[%s1100 + $0x28] sm:$0xf]
      %v1112 = vld [vmem:[%s1100 + $0x2c] sm:$0xf]
      %v1113 = vld [vmem:[%s1100 + $0x30] sm:$0xf]
      %v1114 = vld [vmem:[%s1100 + $0x34] sm:$0xf]
      %v1115 = vld [vmem:[%s1100 + $0x38] sm:$0xf]
      %v1116 = vld [vmem:[%s1100 + $0x3c] sm:$0xf]
      %v1118 = vunpack.c.l.b16 %v1097
      %v1119 = vpack.c.b16 %v916, %v1118
      %v1120 = vrot.slane %v1119, 1
      %v1121 = vrot.slane %v921, 1
      %v1122 = vsel %vm694, %v1120, %v1121
      %v1123 = vrot.slane %v922, 1
      %v1124 = vsel %vm694, %v1121, %v1123
      %v1144 = vunpack.c.l.b16 %v1101
      %v1145 = vunpack.c.l.b16 %v1102
      %v1146 = vunpack.c.l.b16 %v1103
      %v1147 = vunpack.c.l.b16 %v1104
      %v1148 = vunpack.c.l.b16 %v1105
      %v1149 = vunpack.c.l.b16 %v1106
      %v1150 = vunpack.c.l.b16 %v1107
      %v1151 = vunpack.c.l.b16 %v1108
      %v1152 = vunpack.c.l.b16 %v1109
      %v1153 = vunpack.c.l.b16 %v1110
      %v1154 = vunpack.c.l.b16 %v1111
      %v1155 = vunpack.c.l.b16 %v1112
      %v1156 = vunpack.c.l.b16 %v1113
      %v1157 = vunpack.c.l.b16 %v1114
      %v1158 = vunpack.c.l.b16 %v1115
      %v1159 = vunpack.c.l.b16 %v1116
      %v1160 = vpack.c.b16 %v1145, %v1144
      %v1161 = vpack.c.b16 %v1147, %v1146
      %v1162 = vpack.c.b16 %v1149, %v1148
      %v1163 = vpack.c.b16 %v1151, %v1150
      %v1164 = vpack.c.b16 %v1153, %v1152
      %v1165 = vpack.c.b16 %v1155, %v1154
      %v1166 = vpack.c.b16 %v1157, %v1156
      %v1167 = vpack.c.b16 %v1159, %v1158
      %1176 = vmatpush.bf16.msra.mxu0 %v1167
      %1177 = vmatpush.bf16.msra.mxu0 %v1166
      %1178 = vmatpush.bf16.msra.mxu0 %v1165
      %1179 = vmatpush.bf16.msra.mxu0 %v1164
      %1180 = vmatpush.bf16.msra.mxu0 %v1163
      %1181 = vmatpush.bf16.msra.mxu0 %v1162
      %1182 = vmatpush.bf16.msra.mxu0 %v1161
      %1183 = vmatpush.bf16.msra.mxu0 %v1160
      %1184 = vmatmul.bf16.gmra.mxu0 %v1122
      %v1185 = vpop.f32.mrf.mxu0
      %v1186 = vadd.f32 0.0, %v1185
      %v1187 = vpop.f32.mrf.mxu0
      %v1188 = vadd.f32 0.0, %v1187
      %1189 = vmatmul.bf16.gmra.mxu0 %v1124
      %v1190 = vpop.f32.mrf.mxu0
      %v1191 = vadd.f32 0.0, %v1190
      %v1192 = vpop.f32.mrf.mxu0
      %v1193 = vadd.f32 0.0, %v1192
      %1194 = vmatmul.bf16.gmra.mxu0 %v1123
      %v1195 = vpop.f32.mrf.mxu0
      %v1196 = vadd.f32 0.0, %v1195
      %v1197 = vpop.f32.mrf.mxu0
      %1198 = vdwg.mxu0
      %v1199 = vadd.f32 %v1084, %v1186
      %v1200 = vadd.f32 %v1086, %v1188
      %v1201 = vadd.f32 %v1089, %v1191
      %v1202 = vadd.f32 %v1091, %v1193
      %v1203 = vadd.f32 %v1094, %v1196
      %v1204 = vperm.slane %v423, 1
      %v1205 = vadd.f32 %v1199, %v1204
      %v1206 = vadd.f32 %v1200, %v1204
      %v1207 = vadd.f32 %v1201, %v1204
      %v1208 = vadd.f32 %v1202, %v1204
      %v1209 = vadd.f32 %v1203, %v1204
      %v1210 = vld [vmem:[#allocation2 + $0x1] sm:$0xff]
      %v1211 = vld [vmem:[#allocation2 + $0x9] sm:$0xff]
      %v1212 = vld [vmem:[#allocation2 + $0x11] sm:$0xff]
      %v1213 = vld [vmem:[#allocation2 + $0x19] sm:$0xff]
      %v1214 = vld [vmem:[#allocation2 + $0x21] sm:$0x3]
      %v1215 = vadd.f32 %v1210, %v1205
      %v1216 = vadd.f32 %v1211, %v1206
      %v1217 = vadd.f32 %v1212, %v1207
      %v1218 = vadd.f32 %v1213, %v1208
      %v1219 = vadd.f32 %v1214, %v1209
      %v1220 = vmax.f32 %v1215, 0.0
      %v1221 = vmax.f32 %v1216, 0.0
      %v1222 = vmax.f32 %v1217, 0.0
      %v1223 = vmax.f32 %v1218, 0.0
      %v1224 = vmax.f32 %v1219, 0.0
      %v1225 = vmul.f32 %v416, %v1220
      %v1226 = vmul.f32 %v417, %v1221
      %v1227 = vmul.f32 %v418, %v1222
      %v1228 = vmul.f32 %v419, %v1223
      %v1229 = vmul.f32 %v420, %v1224
      %1230 = vst [vmem:[#allocation2 + $0x1] sm:$0xff] %v1225
      %1231 = vst [vmem:[#allocation2 + $0x9] sm:$0xff] %v1226
      %1232 = vst [vmem:[#allocation2 + $0x11] sm:$0xff] %v1227
      %1233 = vst [vmem:[#allocation2 + $0x19] sm:$0xff] %v1228
      %1234 = vst [vmem:[#allocation2 + $0x21] sm:$0x3] %v1229
      %p1235 = scmp.eq.s32.totalorder %s19, 1
      // Predicated region
      $region37: #{flatblock_forward_nchw.1} parent=31 // pred_check
        %p1236 = pneg %p1235
      $region38: #{flatblock_forward_nchw.1} parent=31 // pred_check_branch
        %1238 = sbr.rel (%p1236) target = $region40
      $region39: #{flatblock_forward_nchw.1} parent=31 // pred_region
        %v1239 = vld [vmem:[#allocation2 + $0x1] sm:$0xff]
        %v1240 = vld [vmem:[#allocation2 + $0x9] sm:$0xff]
        %1241 = vst [vmem:[%s189] sm:$0xff] %v1239
        %1242 = vst [vmem:[%s189 + $0x8] sm:$0xff] %v1240
        %v1243 = vld [vmem:[#allocation2 + $0x13] sm:$0xff]
        %v1244 = vld [vmem:[#allocation2 + $0x1b] sm:$0xff]
        %s1245 = scalar_lea.vmem %s189, 16
        %1246 = vst [vmem:[%s1245] sm:$0xff] %v1243
        %1247 = vst [vmem:[%s1245 + $0x8] sm:$0xff] %v1244
      $region40: #{flatblock_forward_nchw.1} parent=31 // pred_fallthru
        _
      %s1248 = smul.u32 2, %s18
      %p1249 = scmp.lt.s32.totalorder %s1248, 1
      %s1250 = scalar_select %p1249, %s1248, 1
      %s1251 = smul.addr %s1250, 2
      %s1252 = smul.addr %s1251, 8
      %s1253 = scalar_lea.vmem %s3, %s1252
      // Predicated region
      $region41: #{flatblock_forward_nchw.1} parent=31 // pred_check
        %p1254 = pneg %p112
      $region42: #{flatblock_forward_nchw.1} parent=31 // pred_check_branch
        %1256 = sbr.rel (%p1254) target = $region44
      $region43: #{flatblock_forward_nchw.1} parent=31 // pred_region
        %s1257 = smul.u32 2, %s18
      $region44: #{flatblock_forward_nchw.1} parent=31 // pred_fallthru
        _
      // Predicated region
      $region45: #{flatblock_forward_nchw.1} parent=31 // pred_check
        %p1258 = pneg %p112
      $region46: #{flatblock_forward_nchw.1} parent=31 // pred_check_branch
        %1260 = sbr.rel (%p1258) target = $region48
      $region47: #{flatblock_forward_nchw.1} parent=31 // pred_region
        %s1261 = smul.u32 2, %s18
        %p1262 = scmp.lt.s32.totalorder %s1261, 1
        %s1263 = scalar_select %p1262, %s1261, 1
        %s1264 = smul.addr %s1263, 2
        %s1265 = smul.addr %s1264, 8
        %s1266 = scalar_lea.vmem %s3, %s1265
      $region48: #{flatblock_forward_nchw.1} parent=31 // pred_fallthru
        _
    $region32: #{flatblock_forward_nchw.1} parent=5 // pred_fallthru
      _
    %p1267 = scmp.le.s32.totalorder 2, %s9
    // Predicated region
    $region49: #{flatblock_forward_nchw.1} parent=5 // pred_check
      %p1268 = pneg %p1267
    $region50: #{flatblock_forward_nchw.1} parent=5 // pred_check_branch
      %1270 = sbr.rel (%p1268) target = $region52
    $region51: #{flatblock_forward_nchw.1} parent=5 // pred_region
      %s1271 = ssub.s32 %s9, 2
    $region52: #{flatblock_forward_nchw.1} parent=5 // pred_fallthru
      _
  $region6: #{flatblock_forward_nchw.1} parent=0 // loop_footer
    %s13 = sadd.s32 1, %s9
  $region7: #{flatblock_forward_nchw.1} parent=0 // loop_footer_branch
    %8 = sbr.rel target = $region3
  $region8: #{flatblock_forward_nchw.1} parent=0 // loop_exit
    _

</llo_original>
